<compile_context>
chip_gen: v5e
topology: v5e:2x2
jax: 0.10.0
libtpu: 0.0.40
codegen_flags: <defaults>
</compile_context>

<pallas_src>
import jax
import jax.numpy as jnp
from jax import lax
from jax.experimental import pallas as pl
from jax.experimental.pallas import tpu as pltpu

_NEG_BIG = -1e30  # finite "-inf": keeps fully-padded tiles / splits NaN-free


def _round_up(a, b):
    return (a + b - 1) // b * b


def _vmem_estimate(tile_n, ell, d_pad):
    """Rough per-step VMEM working set (bytes)."""
    x_bytes = tile_n * ell * 2 * 2                   # bf16 x tile, double-buffered
    tmp_bytes = tile_n * (3 * d_pad + ell) * 4       # gates / gated / p*x f32 temporaries
    w_bytes = ell * 2 * d_pad * 2 * 2                # fused bf16 gate weight, 2 buffers
    return x_bytes + tmp_bytes + w_bytes + (2 << 20)


def _choose_tile_n(n, ell, d_pad, num_splits, vmem_budget_bytes=20 << 20):
    """Largest 128-multiple tile one split actually needs that keeps the working set
    comfortably inside every generation's scoped VMEM (budget sized for v7x; v5e/v6e
    have 128 MiB and could raise it)."""
    per_split = _round_up(max(1, pl.cdiv(n, num_splits)), 128)
    for cand in (4096, 2048, 1024, 512, 256, 128):
        if cand <= per_split and _vmem_estimate(cand, ell, d_pad) <= vmem_budget_bytes:
            return cand
    return 128


def _make_kernel(n_valid, tile_n, tiles_per_split, d_pad, needs_mask):
    def kernel(x_ref, wab_ref, wc_ref,                         # inputs
               acc_out_ref, scores_ref, m_out_ref, l_out_ref,  # outputs
               m_ref, l_ref, acc_ref):                         # VMEM scratch
        # x_ref:      (TN, L)    bf16  current tile of instances (streamed)
        # wab_ref:    (L, 2*Dp)  bf16  fused [Wa^T | Wb^T], resident across grid
        # wc_ref:     (1, Dp)    f32   Wc row (K == 1)
        # acc_out_*:  (1, 1, L)  f32   per-split UNnormalized pooled sum
        # scores_ref: (TN, 1)    f32   raw attention scores for this tile
        # m/l_out:    (1, 1, 1)  f32   per-split online-softmax stats
        # m/l/acc_ref             f32  running online-softmax state (scratch)
        c = pl.program_id(0)   # parallel split (megacore axis on v7x)
        i = pl.program_id(1)   # streaming tile of instances (reduction axis)

        @pl.when(i == 0)
        def _init():
            m_ref[...] = jnp.full_like(m_ref, _NEG_BIG)
            l_ref[...] = jnp.zeros_like(l_ref)
            acc_ref[...] = jnp.zeros_like(acc_ref)

        x = x_ref[...]                                                    # (TN, L) bf16

        # Fused gate matmul: one bf16 MXU pass for both branches, f32 accumulate.
        gates = jnp.dot(x, wab_ref[...], preferred_element_type=jnp.float32)  # (TN, 2*Dp)
        a = jnp.maximum(gates[:, :d_pad], 0.0)                            # ReLU branch
        b = jax.nn.sigmoid(gates[:, d_pad:])                              # sigmoid gate
        gated = a * b                                                     # (TN, Dp) f32

        # K=1 score "matmul" on VPU + lane reduce: keeps the MXU free (no TN-row
        # weight stream, no hidden XLU transpose of the (TN,Dp) tile).
        s_col = jnp.sum(gated * wc_ref[...], axis=1, keepdims=True)       # (TN, 1) f32

        if needs_mask:
            row0 = (c * tiles_per_split + i) * tile_n
            rows = row0 + lax.broadcasted_iota(jnp.int32, (tile_n, 1), 0)
            valid = rows < n_valid
            s_col = jnp.where(valid, s_col, _NEG_BIG)

        scores_ref[...] = s_col                                           # raw scores out

        # Online softmax over the instance axis (K == 1).
        m_prev = m_ref[...]                                               # (1, 1)
        m_new = jnp.maximum(m_prev, jnp.max(s_col, axis=0, keepdims=True))
        alpha = jnp.exp(m_prev - m_new)
        p_col = jnp.exp(s_col - m_new)                                    # (TN, 1)
        if needs_mask:
            p_col = jnp.where(valid, p_col, 0.0)
        l_ref[...] = alpha * l_ref[...] + jnp.sum(p_col, axis=0, keepdims=True)
        # K=1 pooling matmul on VPU: broadcast-multiply with the resident x tile and
        # sublane-reduce (avoids streaming x through the MXU as a TN-deep weight).
        acc_ref[...] = alpha * acc_ref[...] + jnp.sum(
            p_col * x.astype(jnp.float32), axis=0, keepdims=True)         # (1, L)
        m_ref[...] = m_new

        @pl.when(i == pl.num_programs(1) - 1)
        def _finalize():
            acc_out_ref[...] = acc_ref[...].reshape(acc_out_ref.shape)
            m_out_ref[...] = m_ref[...].reshape(m_out_ref.shape)
            l_out_ref[...] = l_ref[...].reshape(l_out_ref.shape)

    return kernel


def attention_gated_forward(x, wa, wb, wc, *, tile_n=None, num_splits=None):
    """x: (N, L). wa, wb: (D, L). wc: (K=1, D). Returns (out (1, L), A (1, N))."""
    n, ell = x.shape
    d = wa.shape[0]
    k = wc.shape[0]
    assert k == 1, "AttentionGated uses K=1"
    assert wa.shape == (d, ell) and wb.shape == (d, ell) and wc.shape == (1, d)

    # ---- one-time parameter prep (hoisted out of the per-call path in a model) ----
    d_pad = _round_up(d, 128)   # keep the relu/sigmoid split on a 128-lane boundary

    def _pad_cols(m):
        return m if m.shape[1] == d_pad else jnp.pad(m, ((0, 0), (0, d_pad - m.shape[1])))

    w_ab = jnp.concatenate(
        [_pad_cols(jnp.asarray(wa, jnp.float32).T),
         _pad_cols(jnp.asarray(wb, jnp.float32).T)], axis=1).astype(jnp.bfloat16)  # (L, 2*Dp)
    wc_row = _pad_cols(jnp.asarray(wc, jnp.float32))                                # (1, Dp)

    # bf16 activations: halves the HBM x stream and feeds the MXU at full bf16 rate;
    # softmax stats / accumulators stay f32.
    # TODO(synk): in a real model the producer should already emit bf16 so this cast fuses away.
    x_bf = jnp.asarray(x, jnp.bfloat16)

    if num_splits is None:
        num_splits = 2 if n >= 256 else 1   # use both v7x TensorCores; harmless on 1-TC chips
    if tile_n is None:
        tile_n = _choose_tile_n(n, ell, d_pad, num_splits)
    assert tile_n % 128 == 0, "tile_n must be a multiple of 128"

    tiles_per_split = pl.cdiv(pl.cdiv(n, num_splits), tile_n)
    n_pad = num_splits * tiles_per_split * tile_n
    if n_pad != n:
        x_bf = jnp.pad(x_bf, ((0, n_pad - n), (0, 0)))

    est = _vmem_estimate(tile_n, ell, d_pad)
    vmem_limit = int(min(max(32 << 20, 2 * est), 48 << 20))   # safe on v7x's 64 MiB

    flops = 2 * n * ell * 2 * d_pad + 2 * n * d_pad + 2 * n * ell + 6 * n * d_pad
    transcendentals = n * d_pad + 2 * n
    bytes_accessed = 2 * n_pad * ell + 2 * ell * 2 * d_pad + 4 * (n_pad + ell + d_pad + 8)

    kernel = _make_kernel(n, tile_n, tiles_per_split, d_pad, needs_mask=(n_pad != n))

    acc_parts, scores, m_parts, l_parts = pl.pallas_call(
        kernel,
        out_shape=(
            jax.ShapeDtypeStruct((num_splits, 1, ell), jnp.float32),  # unnormalized pooled sums
            jax.ShapeDtypeStruct((n_pad, 1), jnp.float32),            # raw attention scores
            jax.ShapeDtypeStruct((num_splits, 1, 1), jnp.float32),    # per-split running max
            jax.ShapeDtypeStruct((num_splits, 1, 1), jnp.float32),    # per-split running sum
        ),
        grid_spec=pltpu.PrefetchScalarGridSpec(
            num_scalar_prefetch=0,
            grid=(num_splits, tiles_per_split),
            in_specs=[
                # x tile streams; sweep pipeline_mode=pl.Buffered(3) here when HBM-bound.
                pl.BlockSpec((tile_n, ell), lambda c, i: (c * tiles_per_split + i, 0)),
                pl.BlockSpec((ell, 2 * d_pad), lambda c, i: (0, 0)),   # fused gate weight
                pl.BlockSpec((1, d_pad), lambda c, i: (0, 0)),         # wc row
            ],
            out_specs=(
                pl.BlockSpec((1, 1, ell), lambda c, i: (c, 0, 0)),
                pl.BlockSpec((tile_n, 1), lambda c, i: (c * tiles_per_split + i, 0)),
                pl.BlockSpec((1, 1, 1), lambda c, i: (c, 0, 0)),
                pl.BlockSpec((1, 1, 1), lambda c, i: (c, 0, 0)),
            ),
            scratch_shapes=[
                pltpu.VMEM((1, 1), jnp.float32),      # running max
                pltpu.VMEM((1, 1), jnp.float32),      # running sum
                pltpu.VMEM((1, ell), jnp.float32),    # running weighted x sum
            ],
        ),
        compiler_params=pltpu.CompilerParams(
            dimension_semantics=("parallel", "arbitrary"),
            vmem_limit_bytes=vmem_limit,
        ),
        cost_estimate=pl.CostEstimate(
            flops=flops, transcendentals=transcendentals, bytes_accessed=bytes_accessed),
    )(x_bf, w_ab, wc_row)

    # Tiny epilogue: merge per-split online-softmax partials (exact) and normalize.
    m_glob = jnp.max(m_parts)                                # scalar
    scale = jnp.exp(m_parts - m_glob)                        # (C, 1, 1)
    l_glob = jnp.sum(l_parts * scale)                        # scalar
    pooled = jnp.sum(acc_parts * scale, axis=0) / l_glob     # (1, L)
    att = (jnp.exp(scores[:n, 0] - m_glob) / l_glob).reshape(1, n)
    return pooled, att


def _reference(x, wa, wb, wc):
    a = jax.nn.relu(x @ wa.T)
    b = jax.nn.sigmoid(x @ wb.T)
    s = (a * b) @ wc.T                    # (N, K)
    att = jax.nn.softmax(s.T, axis=-1)    # (K, N)
    return att @ x, att


if __name__ == "__main__":
    key = jax.random.PRNGKey(0)
    kx, ka, kb, kc = jax.random.split(key, 4)

    # Small shapes consistent with the module: D=128, K=1 fixed; L=input_dim=256.
    n, ell, d, k = 512, 256, 128, 1
    x = jax.random.normal(kx, (n, ell), dtype=jnp.float32)
    # PyTorch-like init: U(-1/sqrt(fan_in), 1/sqrt(fan_in)), bias=False.
    wa = jax.random.uniform(ka, (d, ell), jnp.float32, -1.0 / ell ** 0.5, 1.0 / ell ** 0.5)
    wb = jax.random.uniform(kb, (d, ell), jnp.float32, -1.0 / ell ** 0.5, 1.0 / ell ** 0.5)
    wc = jax.random.uniform(kc, (k, d), jnp.float32, -1.0 / d ** 0.5, 1.0 / d ** 0.5)

    # Case 1: multi-tile streaming + 2-way parallel split (v7x megacore path).
    out, att = attention_gated_forward(x, wa, wb, wc, tile_n=128, num_splits=2)
    jax.block_until_ready((out, att))
    out_ref, att_ref = _reference(x, wa, wb, wc)
    assert out.shape == (k, ell) and att.shape == (k, n)
    assert jnp.allclose(out, out_ref, atol=1e-2, rtol=1e-2), "pooled output mismatch"
    assert jnp.allclose(att, att_ref, atol=1e-2, rtol=1e-2), "attention weights mismatch"

    # Case 2: ragged N (not a multiple of the tile) exercising pad + in-kernel masking.
    n2 = 200
    x2 = x[:n2]
    out2, att2 = attention_gated_forward(x2, wa, wb, wc)
    jax.block_until_ready((out2, att2))
    out2_ref, att2_ref = _reference(x2, wa, wb, wc)
    assert out2.shape == (k, ell) and att2.shape == (k, n2)
    assert jnp.allclose(out2, out2_ref, atol=1e-2, rtol=1e-2), "ragged pooled output mismatch"
    assert jnp.allclose(att2, att2_ref, atol=1e-2, rtol=1e-2), "ragged attention mismatch"

    print("KERNEL_OK")
</pallas_src>

<mosaic_0001>
module attributes {stable_mosaic.version = 11 : i64} {
  func.func @kernel(%arg0: i32, %arg1: i32, %arg2: memref<128x256xbf16, #tpu.memory_space<vmem>>, %arg3: memref<256x256xbf16, #tpu.memory_space<vmem>>, %arg4: memref<1x128xf32, #tpu.memory_space<vmem>>, %arg5: memref<1x1x256xf32, #tpu.memory_space<vmem>>, %arg6: memref<128x1xf32, #tpu.memory_space<vmem>>, %arg7: memref<1x1x1xf32, #tpu.memory_space<vmem>>, %arg8: memref<1x1x1xf32, #tpu.memory_space<vmem>>, %arg9: memref<1x1xf32, #tpu.memory_space<vmem>>, %arg10: memref<1x1xf32, #tpu.memory_space<vmem>>, %arg11: memref<1x256xf32, #tpu.memory_space<vmem>>) attributes {dimension_semantics = [#tpu.dimension_semantics<parallel>, #tpu.dimension_semantics<arbitrary>], iteration_bounds = array<i64: 2, 2>, scalar_prefetch = 0 : i64, scratch_operands = 3 : i64, tpu.core_type = #tpu.core_type<tc>, window_params = [{transform_indices = @transform_0, window_bounds = array<i64: 128, 256>}, {pipeline_mode = #tpu.pipeline_mode<synchronous>, transform_indices = @transform_1, window_bounds = array<i64: 256, 256>}, {pipeline_mode = #tpu.pipeline_mode<synchronous>, transform_indices = @transform_2, window_bounds = array<i64: 1, 128>}, {transform_indices = @transform_3, window_bounds = array<i64: 1, 1, 256>}, {transform_indices = @transform_4, window_bounds = array<i64: 128, 1>}, {transform_indices = @transform_5, window_bounds = array<i64: 1, 1, 1>}, {transform_indices = @transform_6, window_bounds = array<i64: 1, 1, 1>}]} {
    %c0_i32 = arith.constant 0 : i32
    %0 = arith.cmpi eq, %arg1, %c0_i32 : i32
    %1 = arith.extui %0 : i1 to i32
    %c0_i32_0 = arith.constant 0 : i32
    %2 = arith.cmpi ne, %1, %c0_i32_0 : i32
    scf.if %2 {
      %cst_27 = arith.constant -1.000000e+30 : f32
      %51 = vector.broadcast %cst_27 : f32 to vector<1x1xf32>
      %c0_28 = arith.constant 0 : index
      %c0_29 = arith.constant 0 : index
      %52 = vector.load %arg9[%c0_28, %c0_29] : memref<1x1xf32, #tpu.memory_space<vmem>>, vector<1x1xf32>
      tpu.vector_store %arg9[%c0_28, %c0_29], %51 {strides = array<i32>} : memref<1x1xf32, #tpu.memory_space<vmem>>, vector<1x1xf32>,
      %cst_30 = arith.constant 0.000000e+00 : f32
      %53 = vector.broadcast %cst_30 : f32 to vector<1x1xf32>
      %c0_31 = arith.constant 0 : index
      %c0_32 = arith.constant 0 : index
      %54 = vector.load %arg10[%c0_31, %c0_32] : memref<1x1xf32, #tpu.memory_space<vmem>>, vector<1x1xf32>
      tpu.vector_store %arg10[%c0_31, %c0_32], %53 {strides = array<i32>} : memref<1x1xf32, #tpu.memory_space<vmem>>, vector<1x1xf32>,
      %cst_33 = arith.constant 0.000000e+00 : f32
      %55 = vector.broadcast %cst_33 : f32 to vector<1x256xf32>
      %c0_34 = arith.constant 0 : index
      %c0_35 = arith.constant 0 : index
      %56 = vector.load %arg11[%c0_34, %c0_35] : memref<1x256xf32, #tpu.memory_space<vmem>>, vector<1x256xf32>
      tpu.vector_store %arg11[%c0_34, %c0_35], %55 {strides = array<i32>} : memref<1x256xf32, #tpu.memory_space<vmem>>, vector<1x256xf32>,
    } else {
    }
    %c0 = arith.constant 0 : index
    %c0_1 = arith.constant 0 : index
    %3 = vector.load %arg2[%c0, %c0_1] : memref<128x256xbf16, #tpu.memory_space<vmem>>, vector<128x256xbf16>
    %c0_2 = arith.constant 0 : index
    %c0_3 = arith.constant 0 : index
    %4 = vector.load %arg3[%c0_2, %c0_3] : memref<256x256xbf16, #tpu.memory_space<vmem>>, vector<256x256xbf16>
    %cst = arith.constant dense<0.000000e+00> : vector<128x256xf32>
    %5 = tpu.matmul %3, %4, %cst {dimension_numbers = #tpu.dot_dimension_numbers<[1], [0], [0], [1], [0, 0, 1, 1], [], []>} : vector<128x256xbf16>, vector<256x256xbf16>, vector<128x256xf32> -> vector<128x256xf32>
    %6 = vector.extract_strided_slice %5 {offsets = [0, 0], sizes = [128, 128], strides = [1, 1]} : vector<128x256xf32> to vector<128x128xf32>
    %cst_4 = arith.constant 0.000000e+00 : f32
    %7 = vector.broadcast %cst_4 : f32 to vector<128x128xf32>
    %8 = arith.maximumf %6, %7 : vector<128x128xf32>
    %9 = vector.extract_strided_slice %5 {offsets = [0, 128], sizes = [128, 128], strides = [1, 1]} : vector<128x256xf32> to vector<128x128xf32>
    %10 = arith.negf %9 : vector<128x128xf32>
    %11 = math.exp %10 : vector<128x128xf32>
    %cst_5 = arith.constant 1.000000e+00 : f32
    %12 = vector.broadcast %cst_5 : f32 to vector<128x128xf32>
    %13 = arith.addf %12, %11 : vector<128x128xf32>
    %14 = arith.divf %12, %13 : vector<128x128xf32>
    %15 = arith.mulf %8, %14 : vector<128x128xf32>
    %c0_6 = arith.constant 0 : index
    %c0_7 = arith.constant 0 : index
    %16 = vector.load %arg4[%c0_6, %c0_7] : memref<1x128xf32, #tpu.memory_space<vmem>>, vector<1x128xf32>
    %17 = vector.broadcast %16 : vector<1x128xf32> to vector<128x128xf32>
    %18 = arith.mulf %15, %17 : vector<128x128xf32>
    %cst_8 = arith.constant dense<0.000000e+00> : vector<128xf32>
    %19 = vector.multi_reduction <add>, %18, %cst_8 [1] : vector<128x128xf32> to vector<128xf32>
    %20 = vector.shape_cast %19 : vector<128xf32> to vector<128x1xf32>
    %c0_9 = arith.constant 0 : index
    %c0_10 = arith.constant 0 : index
    %21 = vector.load %arg6[%c0_9, %c0_10] : memref<128x1xf32, #tpu.memory_space<vmem>>, vector<128x1xf32>
    tpu.vector_store %arg6[%c0_9, %c0_10], %20 {strides = array<i32>} : memref<128x1xf32, #tpu.memory_space<vmem>>, vector<128x1xf32>,
    %c0_11 = arith.constant 0 : index
    %c0_12 = arith.constant 0 : index
    %22 = vector.load %arg9[%c0_11, %c0_12] : memref<1x1xf32, #tpu.memory_space<vmem>>, vector<1x1xf32>
    %cst_13 = arith.constant dense<0xFF800000> : vector<1xf32>
    %23 = vector.multi_reduction <maximumf>, %20, %cst_13 [0] : vector<128x1xf32> to vector<1xf32>
    %24 = vector.shape_cast %23 : vector<1xf32> to vector<1x1xf32>
    %25 = arith.maximumf %22, %24 : vector<1x1xf32>
    %26 = arith.subf %22, %25 : vector<1x1xf32>
    %27 = math.exp %26 : vector<1x1xf32>
    %28 = vector.broadcast %25 : vector<1x1xf32> to vector<128x1xf32>
    %29 = arith.subf %20, %28 : vector<128x1xf32>
    %30 = math.exp %29 : vector<128x1xf32>
    %c0_14 = arith.constant 0 : index
    %c0_15 = arith.constant 0 : index
    %31 = vector.load %arg10[%c0_14, %c0_15] : memref<1x1xf32, #tpu.memory_space<vmem>>, vector<1x1xf32>
    %32 = arith.mulf %27, %31 : vector<1x1xf32>
    %cst_16 = arith.constant dense<0.000000e+00> : vector<1xf32>
    %33 = vector.multi_reduction <add>, %30, %cst_16 [0] : vector<128x1xf32> to vector<1xf32>
    %34 = vector.shape_cast %33 : vector<1xf32> to vector<1x1xf32>
    %35 = arith.addf %32, %34 : vector<1x1xf32>
    %c0_17 = arith.constant 0 : index
    %c0_18 = arith.constant 0 : index
    %36 = vector.load %arg10[%c0_17, %c0_18] : memref<1x1xf32, #tpu.memory_space<vmem>>, vector<1x1xf32>
    tpu.vector_store %arg10[%c0_17, %c0_18], %35 {strides = array<i32>} : memref<1x1xf32, #tpu.memory_space<vmem>>, vector<1x1xf32>,
    %c0_19 = arith.constant 0 : index
    %c0_20 = arith.constant 0 : index
    %37 = vector.load %arg11[%c0_19, %c0_20] : memref<1x256xf32, #tpu.memory_space<vmem>>, vector<1x256xf32>
    %38 = vector.broadcast %27 : vector<1x1xf32> to vector<1x256xf32>
    %39 = arith.mulf %38, %37 : vector<1x256xf32>
    %40 = arith.extf %3 : vector<128x256xbf16> to vector<128x256xf32>
    %41 = vector.broadcast %30 : vector<128x1xf32> to vector<128x256xf32>
    %42 = arith.mulf %41, %40 : vector<128x256xf32>
    %cst_21 = arith.constant dense<0.000000e+00> : vector<256xf32>
    %43 = vector.multi_reduction <add>, %42, %cst_21 [0] : vector<128x256xf32> to vector<256xf32>
    %44 = vector.shape_cast %43 : vector<256xf32> to vector<1x256xf32>
    %45 = arith.addf %39, %44 : vector<1x256xf32>
    %c0_22 = arith.constant 0 : index
    %c0_23 = arith.constant 0 : index
    %46 = vector.load %arg11[%c0_22, %c0_23] : memref<1x256xf32, #tpu.memory_space<vmem>>, vector<1x256xf32>
    tpu.vector_store %arg11[%c0_22, %c0_23], %45 {strides = array<i32>} : memref<1x256xf32, #tpu.memory_space<vmem>>, vector<1x256xf32>,
    %c0_24 = arith.constant 0 : index
    %c0_25 = arith.constant 0 : index
    %47 = vector.load %arg9[%c0_24, %c0_25] : memref<1x1xf32, #tpu.memory_space<vmem>>, vector<1x1xf32>
    tpu.vector_store %arg9[%c0_24, %c0_25], %25 {strides = array<i32>} : memref<1x1xf32, #tpu.memory_space<vmem>>, vector<1x1xf32>,
    %c1_i32 = arith.constant 1 : i32
    %48 = arith.cmpi eq, %arg1, %c1_i32 : i32
    %49 = arith.extui %48 : i1 to i32
    %c0_i32_26 = arith.constant 0 : i32
    %50 = arith.cmpi ne, %49, %c0_i32_26 : i32
    scf.if %50 {
      %c0_27 = arith.constant 0 : index
      %c0_28 = arith.constant 0 : index
      %51 = vector.load %arg11[%c0_27, %c0_28] : memref<1x256xf32, #tpu.memory_space<vmem>>, vector<1x256xf32>
      %52 = vector.shape_cast %51 : vector<1x256xf32> to vector<1x1x256xf32>
      %c0_29 = arith.constant 0 : index
      %c0_30 = arith.constant 0 : index
      %c0_31 = arith.constant 0 : index
      %53 = vector.load %arg5[%c0_29, %c0_30, %c0_31] : memref<1x1x256xf32, #tpu.memory_space<vmem>>, vector<1x1x256xf32>
      tpu.vector_store %arg5[%c0_29, %c0_30, %c0_31], %52 {strides = array<i32>} : memref<1x1x256xf32, #tpu.memory_space<vmem>>, vector<1x1x256xf32>,
      %c0_32 = arith.constant 0 : index
      %c0_33 = arith.constant 0 : index
      %54 = vector.load %arg9[%c0_32, %c0_33] : memref<1x1xf32, #tpu.memory_space<vmem>>, vector<1x1xf32>
      %55 = vector.shape_cast %54 : vector<1x1xf32> to vector<1x1x1xf32>
      %c0_34 = arith.constant 0 : index
      %c0_35 = arith.constant 0 : index
      %c0_36 = arith.constant 0 : index
      %56 = vector.load %arg7[%c0_34, %c0_35, %c0_36] : memref<1x1x1xf32, #tpu.memory_space<vmem>>, vector<1x1x1xf32>
      tpu.vector_store %arg7[%c0_34, %c0_35, %c0_36], %55 {strides = array<i32>} : memref<1x1x1xf32, #tpu.memory_space<vmem>>, vector<1x1x1xf32>,
      %c0_37 = arith.constant 0 : index
      %c0_38 = arith.constant 0 : index
      %57 = vector.load %arg10[%c0_37, %c0_38] : memref<1x1xf32, #tpu.memory_space<vmem>>, vector<1x1xf32>
      %58 = vector.shape_cast %57 : vector<1x1xf32> to vector<1x1x1xf32>
      %c0_39 = arith.constant 0 : index
      %c0_40 = arith.constant 0 : index
      %c0_41 = arith.constant 0 : index
      %59 = vector.load %arg8[%c0_39, %c0_40, %c0_41] : memref<1x1x1xf32, #tpu.memory_space<vmem>>, vector<1x1x1xf32>
      tpu.vector_store %arg8[%c0_39, %c0_40, %c0_41], %58 {strides = array<i32>} : memref<1x1x1xf32, #tpu.memory_space<vmem>>, vector<1x1x1xf32>,
    } else {
    }
    return
  }
  func.func @transform_0(%arg0: i32, %arg1: i32) -> (i32, i32) {
    %c2_i32 = arith.constant 2 : i32
    %0 = arith.muli %arg0, %c2_i32 : i32
    %1 = arith.addi %0, %arg1 : i32
    %c0_i32 = arith.constant 0 : i32
    %c0_i32_0 = arith.constant 0 : i32
    return %1, %c0_i32 : i32, i32
  }
  func.func @transform_1(%arg0: i32, %arg1: i32) -> (i32, i32) {
    %c0_i32 = arith.constant 0 : i32
    %c0_i32_0 = arith.constant 0 : i32
    %c0_i32_1 = arith.constant 0 : i32
    return %c0_i32, %c0_i32_0 : i32, i32
  }
  func.func @transform_2(%arg0: i32, %arg1: i32) -> (i32, i32) {
    %c0_i32 = arith.constant 0 : i32
    %c0_i32_0 = arith.constant 0 : i32
    %c0_i32_1 = arith.constant 0 : i32
    return %c0_i32, %c0_i32_0 : i32, i32
  }
  func.func @transform_3(%arg0: i32, %arg1: i32) -> (i32, i32, i32) {
    %c0_i32 = arith.constant 0 : i32
    %c0_i32_0 = arith.constant 0 : i32
    %c0_i32_1 = arith.constant 0 : i32
    return %arg0, %c0_i32, %c0_i32_0 : i32, i32, i32
  }
  func.func @transform_4(%arg0: i32, %arg1: i32) -> (i32, i32) {
    %c2_i32 = arith.constant 2 : i32
    %0 = arith.muli %arg0, %c2_i32 : i32
    %1 = arith.addi %0, %arg1 : i32
    %c0_i32 = arith.constant 0 : i32
    %c0_i32_0 = arith.constant 0 : i32
    return %1, %c0_i32 : i32, i32
  }
  func.func @transform_5(%arg0: i32, %arg1: i32) -> (i32, i32, i32) {
    %c0_i32 = arith.constant 0 : i32
    %c0_i32_0 = arith.constant 0 : i32
    %c0_i32_1 = arith.constant 0 : i32
    return %arg0, %c0_i32, %c0_i32_0 : i32, i32, i32
  }
  func.func @transform_6(%arg0: i32, %arg1: i32) -> (i32, i32, i32) {
    %c0_i32 = arith.constant 0 : i32
    %c0_i32_0 = arith.constant 0 : i32
    %c0_i32_1 = arith.constant 0 : i32
    return %arg0, %c0_i32, %c0_i32_0 : i32, i32, i32
  }
}

</mosaic_0001>

<llo_original>
// kernel: tpu_custom_call.1
$region0: #{tpu_custom_call.1}
  #allocation0 [shape = 'u32[]', space=smem, size = 0x4, offset = 0x4, fixed_abs, tag = 'smem constant byte address 0x4 - core index']
  #allocation1 [shape = 'u32[72,128]{1,0:T(1,128)}', space=vmem, size = 0x9000, scoped, tag = 'internal scratch']
  #allocation2 [shape = 'f32[1,1]{1,0:T(1,128)}', space=vmem, size = 0x200, scoped, tag = 'scratch operand']
  #allocation3 [shape = 'f32[1,1]{1,0:T(1,128)}', space=vmem, size = 0x200, scoped, tag = 'scratch operand']
  #allocation4 [shape = 'f32[1,256]{1,0:T(1,128)}', space=vmem, size = 0x400, scoped, tag = 'scratch operand']
  %s0 = inlined_call_operand.hbm [shape: bf16[512,256], index: 0, kind: input, shape index: {}]
  %s1 = inlined_call_operand.hbm [shape: bf16[256,256], index: 1, kind: input, shape index: {}]
  %s2 = inlined_call_operand.vmem [shape: f32[1,128], index: 2, kind: input, shape index: {}]
  %s3 = inlined_call_operand.hbm [shape: f32[2,1,256], index: 3, kind: output, shape index: {0}]
  %s4 = inlined_call_operand.vmem [shape: f32[512,1], index: 4, kind: output, shape index: {1}]
  %s5 = inlined_call_operand.vmem [shape: f32[2,1,1], index: 5, kind: output, shape index: {2}]
  %s6 = inlined_call_operand.vmem [shape: f32[2,1,1], index: 6, kind: output, shape index: {3}]
  %7 = xla_tuple %s3, %s4, %s5, %s6
  %s8 = sld [smem:[#allocation0]]
  $region85: #{tpu_custom_call.1} parent=0
    _
  %s10 = ssub.s32 1, %s8
  %s11 = scalar_select 0, %s10, %s8
  $region1: #{tpu_custom_call.1} parent=0
    #allocation5 [shape = 'u8[131072]{0}', space=vmem, size = 0x20000, scoped, tag = 'input window, operand 0']
    #allocation6 [shape = 's32[2]{0}', space=sflag, size = 0x8, scoped, tag = 'scoped memory for tpu_custom_call.1']
    #allocation7 [shape = 's32[2]{0}', space=sflag, size = 0x8, scoped, tag = 'scoped memory for tpu_custom_call.1']
    #allocation8 [shape = 'u8[131072]{0}', space=vmem, size = 0x20000, scoped, tag = 'input window, operand 1, single buffered']
    #allocation9 [shape = 's32[1]{0}', space=sflag, size = 0x4, scoped, tag = 'scoped memory for tpu_custom_call.1']
    #allocation10 [shape = 'u8[2048]{0}', space=vmem, size = 0x800, scoped, tag = 'output window, operand 0']
    %12 = vsyncpa [#allocation6], 0
    %s13 = scalar_lea.sflag [#allocation6], 1
    %14 = vsyncpa %s13, 0
    %15 = vsyncpa [#allocation9], 0
    %16 = vsyncpa [#allocation7], 0
    %s17 = scalar_lea.sflag [#allocation7], 1
    %18 = vsyncpa %s17, 0
    loop: start=0, step=1, limit=6
    $region2: #{tpu_custom_call.1} parent=1 // loop_pre_header
      _
    $region3: #{tpu_custom_call.1} parent=1 // loop_header
      %s20 = sphi 0, %s24
      %p21 = scmp.ge.s32.totalorder %s20, 6
      %s27 = sphi 0, %s39
      %s28 = sphi 0, %s35
      %s29 = sphi 0, %s27
      %s30 = sphi 0, %s28
      %s31 = sphi 0, %s29
      %s32 = sphi 0, %s30
      %s46 = sphi 0, %s48
      %s49 = sphi 0, %s46
      %s50 = sphi 0, %s49
      %s66 = sphi 0, %s50
      %s70 = sphi 0, %s70
      %s72 = sphi 0, %s70
      %s73 = sphi 0, %s72
      %s87 = sphi 0, %s73
      %s91 = sphi 0, %s91
      %s93 = sphi 0, %s91
      %s94 = sphi 0, %s93
      %s108 = sphi 0, %s94
      %s114 = sphi 0, %s116
      %s117 = sphi 0, %s114
      %s118 = sphi 0, %s117
      %s134 = sphi 0, %s118
      %s144 = sphi 0, %s146
      %s147 = sphi 0, %s144
      %s148 = sphi 0, %s147
      %s164 = sphi 0, %s148
      %s170 = sphi 0, %s172
      %s173 = sphi 0, %s170
      %s174 = sphi 0, %s173
      %s190 = sphi 0, %s174
      %s196 = sphi 0, %s198
      %s199 = sphi 0, %s196
      %s200 = sphi 0, %s199
      %s216 = sphi 0, %s200
    $region4: #{tpu_custom_call.1} parent=1 // loop_header_branch
      %23 = sbr.rel (%p21) target = $region8
    $region5: #{tpu_custom_call.1} parent=1 // loop_body
      %s25 = ssub.s32 %s20, 1
      %s26 = ssub.s32 %s20, 2
      %s33 = sadd.s32 1, %s28
      %p34 = scmp.ge.s32.totalorder %s33, 2
      %s35 = scalar_select %p34, 0, %s33
      %s36 = sadd.s32 1, %s27
      %s37 = scalar_select %p34, %s36, %s27
      %p38 = scmp.ge.s32.totalorder %s37, 2
      %s39 = scalar_select %p38, 0, %s37
      %s40 = smul.u32 %s27, 2
      %s41 = sadd.s32 %s40, %s28
      %s42 = smul.u32 %s39, 2
      %s43 = sadd.s32 %s42, %s35
      %s44 = ssub.s32 %s41, %s43
      %p45 = scmp.eq.s32.totalorder %s44, 0
      %s47 = sadd.s32 %s46, 1
      %s48 = scalar_select %p45, %s46, %s47
      %p51 = pneg %p45
      %p52 = scmp.eq.s32.totalorder %s20, 3
      %p53 = por %p51, %p52
      %p54 = scmp.ne.s32.totalorder %s46, %s49
      %p55 = scmp.eq.s32.totalorder %s20, 0
      %p56 = por %p54, %p55
      %p57 = scmp.ne.s32.totalorder %s46, %s49
      %p58 = scmp.eq.s32.totalorder %s25, 3
      %p59 = por %p57, %p58
      %p60 = scmp.ne.s32.totalorder %s49, %s50
      %p61 = scmp.eq.s32.totalorder %s25, 0
      %p62 = por %p60, %p61
      %p63 = scmp.ne.s32.totalorder %s49, %s50
      %p64 = scmp.eq.s32.totalorder %s26, 3
      %p65 = por %p63, %p64
      %p67 = scmp.ne.s32.totalorder %s50, %s66
      %p68 = scmp.eq.s32.totalorder %s26, 0
      %p69 = por %p67, %p68
      %s71 = sadd.s32 %s70, 1
      %p74 = scmp.eq.s32.totalorder %s20, 3
      %p75 = scmp.ne.s32.totalorder %s70, %s72
      %p76 = scmp.eq.s32.totalorder %s20, 0
      %p77 = por %p75, %p76
      %p78 = scmp.ne.s32.totalorder %s70, %s72
      %p79 = scmp.eq.s32.totalorder %s25, 3
      %p80 = por %p78, %p79
      %p81 = scmp.ne.s32.totalorder %s72, %s73
      %p82 = scmp.eq.s32.totalorder %s25, 0
      %p83 = por %p81, %p82
      %p84 = scmp.ne.s32.totalorder %s72, %s73
      %p85 = scmp.eq.s32.totalorder %s26, 3
      %p86 = por %p84, %p85
      %p88 = scmp.ne.s32.totalorder %s73, %s87
      %p89 = scmp.eq.s32.totalorder %s26, 0
      %p90 = por %p88, %p89
      %s92 = sadd.s32 %s91, 1
      %p95 = scmp.eq.s32.totalorder %s20, 3
      %p96 = scmp.ne.s32.totalorder %s91, %s93
      %p97 = scmp.eq.s32.totalorder %s20, 0
      %p98 = por %p96, %p97
      %p99 = scmp.ne.s32.totalorder %s91, %s93
      %p100 = scmp.eq.s32.totalorder %s25, 3
      %p101 = por %p99, %p100
      %p102 = scmp.ne.s32.totalorder %s93, %s94
      %p103 = scmp.eq.s32.totalorder %s25, 0
      %p104 = por %p102, %p103
      %p105 = scmp.ne.s32.totalorder %s93, %s94
      %p106 = scmp.eq.s32.totalorder %s26, 3
      %p107 = por %p105, %p106
      %p109 = scmp.ne.s32.totalorder %s94, %s108
      %p110 = scmp.eq.s32.totalorder %s26, 0
      %p111 = por %p109, %p110
      %s112 = ssub.s32 %s27, %s39
      %p113 = scmp.eq.s32.totalorder %s112, 0
      %s115 = sadd.s32 %s114, 1
      %s116 = scalar_select %p113, %s114, %s115
      %p119 = pneg %p113
      %p120 = scmp.eq.s32.totalorder %s20, 3
      %p121 = por %p119, %p120
      %p122 = scmp.ne.s32.totalorder %s114, %s117
      %p123 = scmp.eq.s32.totalorder %s20, 0
      %p124 = por %p122, %p123
      %p125 = scmp.ne.s32.totalorder %s114, %s117
      %p126 = scmp.eq.s32.totalorder %s25, 3
      %p127 = por %p125, %p126
      %p128 = scmp.ne.s32.totalorder %s117, %s118
      %p129 = scmp.eq.s32.totalorder %s25, 0
      %p130 = por %p128, %p129
      %p131 = scmp.ne.s32.totalorder %s117, %s118
      %p132 = scmp.eq.s32.totalorder %s26, 3
      %p133 = por %p131, %p132
      %p135 = scmp.ne.s32.totalorder %s118, %s134
      %p136 = scmp.eq.s32.totalorder %s26, 0
      %p137 = por %p135, %p136
      %s138 = smul.u32 %s27, 2
      %s139 = sadd.s32 %s138, %s28
      %s140 = smul.u32 %s39, 2
      %s141 = sadd.s32 %s140, %s35
      %s142 = ssub.s32 %s139, %s141
      %p143 = scmp.eq.s32.totalorder %s142, 0
      %s145 = sadd.s32 %s144, 1
      %s146 = scalar_select %p143, %s144, %s145
      %p149 = pneg %p143
      %p150 = scmp.eq.s32.totalorder %s20, 3
      %p151 = por %p149, %p150
      %p152 = scmp.ne.s32.totalorder %s144, %s147
      %p153 = scmp.eq.s32.totalorder %s20, 0
      %p154 = por %p152, %p153
      %p155 = scmp.ne.s32.totalorder %s144, %s147
      %p156 = scmp.eq.s32.totalorder %s25, 3
      %p157 = por %p155, %p156
      %p158 = scmp.ne.s32.totalorder %s147, %s148
      %p159 = scmp.eq.s32.totalorder %s25, 0
      %p160 = por %p158, %p159
      %p161 = scmp.ne.s32.totalorder %s147, %s148
      %p162 = scmp.eq.s32.totalorder %s26, 3
      %p163 = por %p161, %p162
      %p165 = scmp.ne.s32.totalorder %s148, %s164
      %p166 = scmp.eq.s32.totalorder %s26, 0
      %p167 = por %p165, %p166
      %s168 = ssub.s32 %s27, %s39
      %p169 = scmp.eq.s32.totalorder %s168, 0
      %s171 = sadd.s32 %s170, 1
      %s172 = scalar_select %p169, %s170, %s171
      %p175 = pneg %p169
      %p176 = scmp.eq.s32.totalorder %s20, 3
      %p177 = por %p175, %p176
      %p178 = scmp.ne.s32.totalorder %s170, %s173
      %p179 = scmp.eq.s32.totalorder %s20, 0
      %p180 = por %p178, %p179
      %p181 = scmp.ne.s32.totalorder %s170, %s173
      %p182 = scmp.eq.s32.totalorder %s25, 3
      %p183 = por %p181, %p182
      %p184 = scmp.ne.s32.totalorder %s173, %s174
      %p185 = scmp.eq.s32.totalorder %s25, 0
      %p186 = por %p184, %p185
      %p187 = scmp.ne.s32.totalorder %s173, %s174
      %p188 = scmp.eq.s32.totalorder %s26, 3
      %p189 = por %p187, %p188
      %p191 = scmp.ne.s32.totalorder %s174, %s190
      %p192 = scmp.eq.s32.totalorder %s26, 0
      %p193 = por %p191, %p192
      %s194 = ssub.s32 %s27, %s39
      %p195 = scmp.eq.s32.totalorder %s194, 0
      %s197 = sadd.s32 %s196, 1
      %s198 = scalar_select %p195, %s196, %s197
      %p201 = pneg %p195
      %p202 = scmp.eq.s32.totalorder %s20, 3
      %p203 = por %p201, %p202
      %p204 = scmp.ne.s32.totalorder %s196, %s199
      %p205 = scmp.eq.s32.totalorder %s20, 0
      %p206 = por %p204, %p205
      %p207 = scmp.ne.s32.totalorder %s196, %s199
      %p208 = scmp.eq.s32.totalorder %s25, 3
      %p209 = por %p207, %p208
      %p210 = scmp.ne.s32.totalorder %s199, %s200
      %p211 = scmp.eq.s32.totalorder %s25, 0
      %p212 = por %p210, %p211
      %p213 = scmp.ne.s32.totalorder %s199, %s200
      %p214 = scmp.eq.s32.totalorder %s26, 3
      %p215 = por %p213, %p214
      %p217 = scmp.ne.s32.totalorder %s200, %s216
      %p218 = scmp.eq.s32.totalorder %s26, 0
      %p219 = por %p217, %p218
      %p220 = scmp.le.s32.totalorder 1, %s20
      %p221 = scmp.lt.s32.totalorder %s20, 5
      %p222 = pnand %p220, %p221
      %p223 = pneg %p222
      // Predicated region
      $region9: #{tpu_custom_call.1} parent=5 // pred_check
        _
      $region10: #{tpu_custom_call.1} parent=5 // pred_check_branch
        %225 = sbr.rel (%p222) target = $region12
      $region11: #{tpu_custom_call.1} parent=5 // pred_region
        %s226 = ssub.s32 %s20, 1
        // Predicated region
        $region13: #{tpu_custom_call.1} parent=11 // pred_check
          %p227 = pneg %p83
        $region14: #{tpu_custom_call.1} parent=11 // pred_check_branch
          %229 = sbr.rel (%p227) target = $region16
        $region15: #{tpu_custom_call.1} parent=11 // pred_region
          %231 = vsyncadd [#allocation9], 0
          %s232 = sshll.u32 %s1, 4
          %s233 = int_to_ptr.hbm [resolvable:$true] %s232
          %s234 = sshll.u32 [#allocation8], 4
          %s235 = int_to_ptr.vmem [resolvable:$true] %s234
          %240 = dma.hbm_to_vmem [thread:$0]  %s233, 4096, %s235, [#allocation9], 128, 128, 8
        $region16: #{tpu_custom_call.1} parent=11 // pred_fallthru
          _
        // Predicated region
        $region17: #{tpu_custom_call.1} parent=11 // pred_check
          %p241 = pneg %p104
        $region18: #{tpu_custom_call.1} parent=11 // pred_check_branch
          %243 = sbr.rel (%p241) target = $region20
        $region19: #{tpu_custom_call.1} parent=11 // pred_region
          _
        $region20: #{tpu_custom_call.1} parent=11 // pred_fallthru
          _
      $region12: #{tpu_custom_call.1} parent=5 // pred_fallthru
        _
      %p244 = scmp.lt.s32.totalorder %s20, 4
      // Predicated region
      $region21: #{tpu_custom_call.1} parent=5 // pred_check
        %p245 = pneg %p244
      $region22: #{tpu_custom_call.1} parent=5 // pred_check_branch
        %247 = sbr.rel (%p245) target = $region24
      $region23: #{tpu_custom_call.1} parent=5 // pred_region
        // Predicated region
        $region25: #{tpu_custom_call.1} parent=23 // pred_check
          %p248 = pneg %p56
        $region26: #{tpu_custom_call.1} parent=23 // pred_check_branch
          %250 = sbr.rel (%p248) target = $region28
        $region27: #{tpu_custom_call.1} parent=23 // pred_region
          %s251 = sand.u32 %s46, 1
          %s252 = scalar_lea.sflag [#allocation6], %s251
          %s253 = sand.u32 %s46, 1
          %s254 = smul.addr %s253, 128
          %s255 = scalar_lea.vmem [#allocation5], %s254
          %s256 = smul.u32 %s27, 2
          %s257 = sadd.s32 %s256, %s28
          %s258 = smul.u32 16, %s257
          %260 = vsyncadd %s252, 0
          %s261 = smul.addr %s258, 2
          %s262 = smul.addr %s261, 4
          %s263 = scalar_lea.hbm %s0, %s262
          %s264 = sshll.u32 %s263, 4
          %s265 = int_to_ptr.hbm [resolvable:$true] %s264
          %s266 = sshll.u32 %s255, 4
          %s267 = int_to_ptr.vmem [resolvable:$true] %s266
          %272 = dma.hbm_to_vmem [thread:$0]  %s265, 2048, %s267, %s252, 128, 128, 8
        $region28: #{tpu_custom_call.1} parent=23 // pred_fallthru
          _
      $region24: #{tpu_custom_call.1} parent=5 // pred_fallthru
        _
      %p273 = scmp.le.s32.totalorder 1, %s20
      %p274 = scmp.lt.s32.totalorder %s20, 5
      %p275 = pnand %p273, %p274
      %p276 = pneg %p275
      // Predicated region
      $region29: #{tpu_custom_call.1} parent=5 // pred_check
        _
      $region30: #{tpu_custom_call.1} parent=5 // pred_check_branch
        %278 = sbr.rel (%p275) target = $region32
      $region31: #{tpu_custom_call.1} parent=5 // pred_region
        %s279 = ssub.s32 %s20, 1
        %s280 = sand.u32 %s49, 1
        %s281 = scalar_lea.sflag [#allocation6], %s280
        %s282 = sand.u32 %s49, 1
        %s283 = smul.addr %s282, 128
        %s284 = scalar_lea.vmem [#allocation5], %s283
        // Predicated region
        $region33: #{tpu_custom_call.1} parent=31 // pred_check
          %p285 = pneg %p62
        $region34: #{tpu_custom_call.1} parent=31 // pred_check_branch
          %287 = sbr.rel (%p285) target = $region36
        $region35: #{tpu_custom_call.1} parent=31 // pred_region
          %289 = dma.done %s281, 2048
        $region36: #{tpu_custom_call.1} parent=31 // pred_fallthru
          _
        // Predicated region
        $region37: #{tpu_custom_call.1} parent=31 // pred_check
          %p290 = pneg %p83
        $region38: #{tpu_custom_call.1} parent=31 // pred_check_branch
          %292 = sbr.rel (%p290) target = $region40
        $region39: #{tpu_custom_call.1} parent=31 // pred_region
          %294 = dma.done [#allocation9], 4096
        $region40: #{tpu_custom_call.1} parent=31 // pred_fallthru
          _
        %s295 = sand.u32 %s49, 1
        %s296 = scalar_lea.sflag [#allocation6], %s295
        %s297 = sand.u32 %s49, 1
        %s298 = smul.addr %s297, 128
        %s299 = scalar_lea.vmem [#allocation5], %s298
        %p300 = pneg %p62
        %p301 = pneg %p59
        %p302 = pneg %p83
        %p303 = pneg %p80
        %p304 = pneg %p104
        %p305 = pneg %p101
        %p306 = pneg %p130
        %p307 = pneg %p127
        %s308 = sand.u32 %s117, 1
        %s309 = scalar_lea.sflag [#allocation7], %s308
        %s310 = sand.u32 %s117, 1
        %s311 = smul.addr %s310, 2
        %s312 = scalar_lea.vmem [#allocation10], %s311
        %p313 = pneg %p160
        %p314 = pneg %p157
        %s315 = smul.u32 %s29, 2
        %s316 = sadd.s32 %s315, %s30
        %s317 = smul.u32 16, %s316
        %p318 = scmp.lt.s32.totalorder %s317, 63
        %s319 = scalar_select %p318, %s317, 63
        %s320 = smul.addr %s319, 8
        %s321 = scalar_lea.vmem %s4, %s320
        %p322 = pneg %p186
        %p323 = pneg %p183
        %p324 = scmp.lt.s32.totalorder %s29, 1
        %s325 = scalar_select %p324, %s29, 1
        %s326 = scalar_lea.vmem %s5, %s325
        %p327 = pneg %p212
        %p328 = pneg %p209
        %p329 = scmp.lt.s32.totalorder %s29, 1
        %s330 = scalar_select %p329, %s29, 1
        %s331 = scalar_lea.vmem %s6, %s330
        %s332 = smul.u32 %s29, 2
        %s333 = sadd.s32 %s332, %s30
        %s334 = smul.u32 16, %s333
        %s335 = smul.u32 %s29, 2
        %s336 = sadd.s32 %s335, %s30
        %s337 = smul.u32 16, %s336
        %p338 = scmp.lt.s32.totalorder %s337, 63
        %s339 = scalar_select %p338, %s337, 63
        %s340 = smul.addr %s339, 8
        %s341 = scalar_lea.vmem %s4, %s340
        %s342 = smul.u32 %s29, 2
        %s343 = sadd.s32 %s342, %s30
        %s344 = smul.u32 16, %s343
        %p345 = scmp.lt.s32.totalorder %s29, 1
        %s346 = scalar_select %p345, %s29, 1
        %s347 = scalar_lea.vmem %s5, %s346
        %p348 = scmp.lt.s32.totalorder %s29, 1
        %s349 = scalar_select %p348, %s29, 1
        %s350 = scalar_lea.vmem %s6, %s349
        %p351 = scmp.eq.s32.totalorder %s30, 0
        // Predicated region
        $region41: #{tpu_custom_call.1} parent=31 // pred_check
          %p352 = pneg %p351
        $region42: #{tpu_custom_call.1} parent=31 // pred_check_branch
          %354 = sbr.rel (%p352) target = $region44
        $region43: #{tpu_custom_call.1} parent=31 // pred_region
          %vm355 = vcmask 0
          %356 = vst.msk [vmem:[#allocation2] sm:$0x1] %vm355, -1e+30
          %357 = vst.msk [vmem:[#allocation3] sm:$0x1] %vm355, 0.0
          %v358 = vlaneseq
          %vm359 = vcmp.ge.s32.totalorder %v358, 0
          %vm360 = vcmp.lt.s32.totalorder %v358, 256
          %vm361 = vmand %vm359, %vm360
          %362 = vst.msk [vmem:[#allocation4] sm:$0x3] %vm361, 0.0
        $region44: #{tpu_custom_call.1} parent=31 // pred_fallthru
          _
        %v363 = vld [vmem:[%s284] sm:$0xff]
        %v364 = vld [vmem:[%s284 + $0x8] sm:$0xff]
        %v365 = vld [vmem:[%s284 + $0x10] sm:$0xff]
        %v366 = vld [vmem:[%s284 + $0x18] sm:$0xff]
        %v367 = vld [vmem:[%s284 + $0x20] sm:$0xff]
        %v368 = vld [vmem:[%s284 + $0x28] sm:$0xff]
        %v369 = vld [vmem:[%s284 + $0x30] sm:$0xff]
        %v370 = vld [vmem:[%s284 + $0x38] sm:$0xff]
        %v371 = vld [vmem:[%s284 + $0x40] sm:$0xff]
        %v372 = vld [vmem:[%s284 + $0x48] sm:$0xff]
        %v373 = vld [vmem:[%s284 + $0x50] sm:$0xff]
        %v374 = vld [vmem:[%s284 + $0x58] sm:$0xff]
        %v375 = vld [vmem:[%s284 + $0x60] sm:$0xff]
        %v376 = vld [vmem:[%s284 + $0x68] sm:$0xff]
        %v377 = vld [vmem:[%s284 + $0x70] sm:$0xff]
        %v378 = vld [vmem:[%s284 + $0x78] sm:$0xff]
        %v379 = vld [vmem:[#allocation8] sm:$0xff]
        %v380 = vld [vmem:[#allocation8 + $0x8] sm:$0xff]
        %v381 = vld [vmem:[#allocation8 + $0x10] sm:$0xff]
        %v382 = vld [vmem:[#allocation8 + $0x18] sm:$0xff]
        %v383 = vld [vmem:[#allocation8 + $0x20] sm:$0xff]
        %v384 = vld [vmem:[#allocation8 + $0x28] sm:$0xff]
        %v385 = vld [vmem:[#allocation8 + $0x30] sm:$0xff]
        %v386 = vld [vmem:[#allocation8 + $0x38] sm:$0xff]
        %v387 = vld [vmem:[#allocation8 + $0x40] sm:$0xff]
        %v388 = vld [vmem:[#allocation8 + $0x48] sm:$0xff]
        %v389 = vld [vmem:[#allocation8 + $0x50] sm:$0xff]
        %v390 = vld [vmem:[#allocation8 + $0x58] sm:$0xff]
        %v391 = vld [vmem:[#allocation8 + $0x60] sm:$0xff]
        %v392 = vld [vmem:[#allocation8 + $0x68] sm:$0xff]
        %v393 = vld [vmem:[#allocation8 + $0x70] sm:$0xff]
        %v394 = vld [vmem:[#allocation8 + $0x78] sm:$0xff]
        %v395 = vld [vmem:[#allocation8 + $0x80] sm:$0xff]
        %v396 = vld [vmem:[#allocation8 + $0x88] sm:$0xff]
        %v397 = vld [vmem:[#allocation8 + $0x90] sm:$0xff]
        %v398 = vld [vmem:[#allocation8 + $0x98] sm:$0xff]
        %v399 = vld [vmem:[#allocation8 + $0xa0] sm:$0xff]
        %v400 = vld [vmem:[#allocation8 + $0xa8] sm:$0xff]
        %v401 = vld [vmem:[#allocation8 + $0xb0] sm:$0xff]
        %v402 = vld [vmem:[#allocation8 + $0xb8] sm:$0xff]
        %v403 = vld [vmem:[#allocation8 + $0xc0] sm:$0xff]
        %v404 = vld [vmem:[#allocation8 + $0xc8] sm:$0xff]
        %v405 = vld [vmem:[#allocation8 + $0xd0] sm:$0xff]
        %v406 = vld [vmem:[#allocation8 + $0xd8] sm:$0xff]
        %v407 = vld [vmem:[#allocation8 + $0xe0] sm:$0xff]
        %v408 = vld [vmem:[#allocation8 + $0xe8] sm:$0xff]
        %v409 = vld [vmem:[#allocation8 + $0xf0] sm:$0xff]
        %v410 = vld [vmem:[#allocation8 + $0xf8] sm:$0xff]
        %v427 = vunpack.c.l.b16 %v363
        %v428 = vunpack.c.h.b16 %v363
        %v429 = vunpack.c.l.b16 %v364
        %v430 = vunpack.c.h.b16 %v364
        %v431 = vunpack.c.l.b16 %v365
        %v432 = vunpack.c.h.b16 %v365
        %v433 = vunpack.c.l.b16 %v366
        %v434 = vunpack.c.h.b16 %v366
        %v435 = vunpack.c.l.b16 %v367
        %v436 = vunpack.c.h.b16 %v367
        %v437 = vunpack.c.l.b16 %v368
        %v438 = vunpack.c.h.b16 %v368
        %v439 = vunpack.c.l.b16 %v369
        %v440 = vunpack.c.h.b16 %v369
        %v441 = vunpack.c.l.b16 %v370
        %v442 = vunpack.c.h.b16 %v370
        %v443 = vunpack.c.l.b16 %v371
        %v444 = vunpack.c.h.b16 %v371
        %v445 = vunpack.c.l.b16 %v372
        %v446 = vunpack.c.h.b16 %v372
        %v447 = vunpack.c.l.b16 %v373
        %v448 = vunpack.c.h.b16 %v373
        %v449 = vunpack.c.l.b16 %v374
        %v450 = vunpack.c.h.b16 %v374
        %v451 = vunpack.c.l.b16 %v375
        %v452 = vunpack.c.h.b16 %v375
        %v453 = vunpack.c.l.b16 %v376
        %v454 = vunpack.c.h.b16 %v376
        %v455 = vunpack.c.l.b16 %v377
        %v456 = vunpack.c.h.b16 %v377
        %v457 = vunpack.c.l.b16 %v378
        %v458 = vunpack.c.h.b16 %v378
        %v459 = vpack.c.b16 %v429, %v427
        %v460 = vpack.c.b16 %v430, %v428
        %v461 = vpack.c.b16 %v433, %v431
        %v462 = vpack.c.b16 %v434, %v432
        %v463 = vpack.c.b16 %v437, %v435
        %v464 = vpack.c.b16 %v438, %v436
        %v465 = vpack.c.b16 %v441, %v439
        %v466 = vpack.c.b16 %v442, %v440
        %v467 = vpack.c.b16 %v445, %v443
        %v468 = vpack.c.b16 %v446, %v444
        %v469 = vpack.c.b16 %v449, %v447
        %v470 = vpack.c.b16 %v450, %v448
        %v471 = vpack.c.b16 %v453, %v451
        %v472 = vpack.c.b16 %v454, %v452
        %v473 = vpack.c.b16 %v457, %v455
        %v474 = vpack.c.b16 %v458, %v456
        %v523 = vunpack.c.l.b16 %v379
        %v524 = vunpack.c.h.b16 %v379
        %v525 = vunpack.c.l.b16 %v380
        %v526 = vunpack.c.h.b16 %v380
        %v527 = vunpack.c.l.b16 %v381
        %v528 = vunpack.c.h.b16 %v381
        %v529 = vunpack.c.l.b16 %v382
        %v530 = vunpack.c.h.b16 %v382
        %v531 = vunpack.c.l.b16 %v383
        %v532 = vunpack.c.h.b16 %v383
        %v533 = vunpack.c.l.b16 %v384
        %v534 = vunpack.c.h.b16 %v384
        %v535 = vunpack.c.l.b16 %v385
        %v536 = vunpack.c.h.b16 %v385
        %v537 = vunpack.c.l.b16 %v386
        %v538 = vunpack.c.h.b16 %v386
        %v539 = vunpack.c.l.b16 %v387
        %v540 = vunpack.c.h.b16 %v387
        %v541 = vunpack.c.l.b16 %v388
        %v542 = vunpack.c.h.b16 %v388
        %v543 = vunpack.c.l.b16 %v389
        %v544 = vunpack.c.h.b16 %v389
        %v545 = vunpack.c.l.b16 %v390
        %v546 = vunpack.c.h.b16 %v390
        %v547 = vunpack.c.l.b16 %v391
        %v548 = vunpack.c.h.b16 %v391
        %v549 = vunpack.c.l.b16 %v392
        %v550 = vunpack.c.h.b16 %v392
        %v551 = vunpack.c.l.b16 %v393
        %v552 = vunpack.c.h.b16 %v393
        %v553 = vunpack.c.l.b16 %v394
        %v554 = vunpack.c.h.b16 %v394
        %v555 = vunpack.c.l.b16 %v395
        %v556 = vunpack.c.h.b16 %v395
        %v557 = vunpack.c.l.b16 %v396
        %v558 = vunpack.c.h.b16 %v396
        %v559 = vunpack.c.l.b16 %v397
        %v560 = vunpack.c.h.b16 %v397
        %v561 = vunpack.c.l.b16 %v398
        %v562 = vunpack.c.h.b16 %v398
        %v563 = vunpack.c.l.b16 %v399
        %v564 = vunpack.c.h.b16 %v399
        %v565 = vunpack.c.l.b16 %v400
        %v566 = vunpack.c.h.b16 %v400
        %v567 = vunpack.c.l.b16 %v401
        %v568 = vunpack.c.h.b16 %v401
        %v569 = vunpack.c.l.b16 %v402
        %v570 = vunpack.c.h.b16 %v402
        %v571 = vunpack.c.l.b16 %v403
        %v572 = vunpack.c.h.b16 %v403
        %v573 = vunpack.c.l.b16 %v404
        %v574 = vunpack.c.h.b16 %v404
        %v575 = vunpack.c.l.b16 %v405
        %v576 = vunpack.c.h.b16 %v405
        %v577 = vunpack.c.l.b16 %v406
        %v578 = vunpack.c.h.b16 %v406
        %v579 = vunpack.c.l.b16 %v407
        %v580 = vunpack.c.h.b16 %v407
        %v581 = vunpack.c.l.b16 %v408
        %v582 = vunpack.c.h.b16 %v408
        %v583 = vunpack.c.l.b16 %v409
        %v584 = vunpack.c.h.b16 %v409
        %v585 = vunpack.c.l.b16 %v410
        %v586 = vunpack.c.h.b16 %v410
        %v587 = vpack.c.b16 %v525, %v523
        %v588 = vpack.c.b16 %v526, %v524
        %v589 = vpack.c.b16 %v529, %v527
        %v590 = vpack.c.b16 %v530, %v528
        %v591 = vpack.c.b16 %v533, %v531
        %v592 = vpack.c.b16 %v534, %v532
        %v593 = vpack.c.b16 %v537, %v535
        %v594 = vpack.c.b16 %v538, %v536
        %v595 = vpack.c.b16 %v541, %v539
        %v596 = vpack.c.b16 %v542, %v540
        %v597 = vpack.c.b16 %v545, %v543
        %v598 = vpack.c.b16 %v546, %v544
        %v599 = vpack.c.b16 %v549, %v547
        %v600 = vpack.c.b16 %v550, %v548
        %v601 = vpack.c.b16 %v553, %v551
        %v602 = vpack.c.b16 %v554, %v552
        %v603 = vpack.c.b16 %v557, %v555
        %v604 = vpack.c.b16 %v558, %v556
        %v605 = vpack.c.b16 %v561, %v559
        %v606 = vpack.c.b16 %v562, %v560
        %v607 = vpack.c.b16 %v565, %v563
        %v608 = vpack.c.b16 %v566, %v564
        %v609 = vpack.c.b16 %v569, %v567
        %v610 = vpack.c.b16 %v570, %v568
        %v611 = vpack.c.b16 %v573, %v571
        %v612 = vpack.c.b16 %v574, %v572
        %v613 = vpack.c.b16 %v577, %v575
        %v614 = vpack.c.b16 %v578, %v576
        %v615 = vpack.c.b16 %v581, %v579
        %v616 = vpack.c.b16 %v582, %v580
        %v617 = vpack.c.b16 %v585, %v583
        %v618 = vpack.c.b16 %v586, %v584
        %651 = vmatpush.bf16.msra.mxu0 %v601
        %652 = vmatpush.bf16.msra.mxu0 %v599
        %653 = vmatpush.bf16.msra.mxu0 %v597
        %654 = vmatpush.bf16.msra.mxu0 %v595
        %655 = vmatpush.bf16.msra.mxu0 %v593
        %656 = vmatpush.bf16.msra.mxu0 %v591
        %657 = vmatpush.bf16.msra.mxu0 %v589
        %658 = vmatpush.bf16.msra.mxu0 %v587
        %659 = vmatmul.bf16.gmra.mxu0 %v459
        %v660 = vpop.f32.mrf.mxu0
        %v661 = vadd.f32 0.0, %v660
        %v662 = vpop.f32.mrf.mxu0
        %v663 = vadd.f32 0.0, %v662
        %664 = vmatmul.bf16.gmra.mxu0 %v461
        %v665 = vpop.f32.mrf.mxu0
        %v666 = vadd.f32 0.0, %v665
        %v667 = vpop.f32.mrf.mxu0
        %v668 = vadd.f32 0.0, %v667
        %669 = vmatmul.bf16.gmra.mxu0 %v463
        %v670 = vpop.f32.mrf.mxu0
        %v671 = vadd.f32 0.0, %v670
        %v672 = vpop.f32.mrf.mxu0
        %v673 = vadd.f32 0.0, %v672
        %674 = vmatmul.bf16.gmra.mxu0 %v465
        %v675 = vpop.f32.mrf.mxu0
        %v676 = vadd.f32 0.0, %v675
        %v677 = vpop.f32.mrf.mxu0
        %v678 = vadd.f32 0.0, %v677
        %679 = vmatmul.bf16.gmra.mxu0 %v467
        %v680 = vpop.f32.mrf.mxu0
        %v681 = vadd.f32 0.0, %v680
        %v682 = vpop.f32.mrf.mxu0
        %v683 = vadd.f32 0.0, %v682
        %684 = vmatmul.bf16.gmra.mxu0 %v469
        %v685 = vpop.f32.mrf.mxu0
        %v686 = vadd.f32 0.0, %v685
        %v687 = vpop.f32.mrf.mxu0
        %v688 = vadd.f32 0.0, %v687
        %689 = vmatmul.bf16.gmra.mxu0 %v471
        %v690 = vpop.f32.mrf.mxu0
        %v691 = vadd.f32 0.0, %v690
        %v692 = vpop.f32.mrf.mxu0
        %v693 = vadd.f32 0.0, %v692
        %694 = vmatmul.bf16.gmra.mxu0 %v473
        %v695 = vpop.f32.mrf.mxu0
        %v696 = vadd.f32 0.0, %v695
        %v697 = vpop.f32.mrf.mxu0
        %v698 = vadd.f32 0.0, %v697
        %699 = vdwg.mxu0
        %700 = vmatpush.bf16.msra.mxu0 %v617
        %701 = vmatpush.bf16.msra.mxu0 %v615
        %702 = vmatpush.bf16.msra.mxu0 %v613
        %703 = vmatpush.bf16.msra.mxu0 %v611
        %704 = vmatpush.bf16.msra.mxu0 %v609
        %705 = vmatpush.bf16.msra.mxu0 %v607
        %706 = vmatpush.bf16.msra.mxu0 %v605
        %707 = vmatpush.bf16.msra.mxu0 %v603
        %708 = vmatmul.bf16.gmra.mxu0 %v460
        %v709 = vpop.f32.mrf.mxu0
        %v710 = vadd.f32 %v661, %v709
        %v711 = vpop.f32.mrf.mxu0
        %v712 = vadd.f32 %v663, %v711
        %713 = vmatmul.bf16.gmra.mxu0 %v462
        %v714 = vpop.f32.mrf.mxu0
        %v715 = vadd.f32 %v666, %v714
        %v716 = vpop.f32.mrf.mxu0
        %v717 = vadd.f32 %v668, %v716
        %718 = vmatmul.bf16.gmra.mxu0 %v464
        %v719 = vpop.f32.mrf.mxu0
        %v720 = vadd.f32 %v671, %v719
        %v721 = vpop.f32.mrf.mxu0
        %v722 = vadd.f32 %v673, %v721
        %723 = vmatmul.bf16.gmra.mxu0 %v466
        %v724 = vpop.f32.mrf.mxu0
        %v725 = vadd.f32 %v676, %v724
        %v726 = vpop.f32.mrf.mxu0
        %v727 = vadd.f32 %v678, %v726
        %728 = vmatmul.bf16.gmra.mxu0 %v468
        %v729 = vpop.f32.mrf.mxu0
        %v730 = vadd.f32 %v681, %v729
        %v731 = vpop.f32.mrf.mxu0
        %v732 = vadd.f32 %v683, %v731
        %733 = vmatmul.bf16.gmra.mxu0 %v470
        %v734 = vpop.f32.mrf.mxu0
        %v735 = vadd.f32 %v686, %v734
        %v736 = vpop.f32.mrf.mxu0
        %v737 = vadd.f32 %v688, %v736
        %738 = vmatmul.bf16.gmra.mxu0 %v472
        %v739 = vpop.f32.mrf.mxu0
        %v740 = vadd.f32 %v691, %v739
        %v741 = vpop.f32.mrf.mxu0
        %v742 = vadd.f32 %v693, %v741
        %743 = vmatmul.bf16.gmra.mxu0 %v474
        %v744 = vpop.f32.mrf.mxu0
        %v745 = vadd.f32 %v696, %v744
        %v746 = vpop.f32.mrf.mxu0
        %v747 = vadd.f32 %v698, %v746
        %748 = vdwg.mxu0
        %749 = vmatpush.bf16.msra.mxu0 %v602
        %750 = vmatpush.bf16.msra.mxu0 %v600
        %751 = vmatpush.bf16.msra.mxu0 %v598
        %752 = vmatpush.bf16.msra.mxu0 %v596
        %753 = vmatpush.bf16.msra.mxu0 %v594
        %754 = vmatpush.bf16.msra.mxu0 %v592
        %755 = vmatpush.bf16.msra.mxu0 %v590
        %756 = vmatpush.bf16.msra.mxu0 %v588
        %757 = vmatmul.bf16.gmra.mxu0 %v459
        %v758 = vpop.f32.mrf.mxu0
        %v759 = vadd.f32 0.0, %v758
        %v760 = vpop.f32.mrf.mxu0
        %v761 = vadd.f32 0.0, %v760
        %762 = vmatmul.bf16.gmra.mxu0 %v461
        %v763 = vpop.f32.mrf.mxu0
        %v764 = vadd.f32 0.0, %v763
        %v765 = vpop.f32.mrf.mxu0
        %v766 = vadd.f32 0.0, %v765
        %767 = vmatmul.bf16.gmra.mxu0 %v463
        %v768 = vpop.f32.mrf.mxu0
        %v769 = vadd.f32 0.0, %v768
        %v770 = vpop.f32.mrf.mxu0
        %v771 = vadd.f32 0.0, %v770
        %772 = vmatmul.bf16.gmra.mxu0 %v465
        %v773 = vpop.f32.mrf.mxu0
        %v774 = vadd.f32 0.0, %v773
        %v775 = vpop.f32.mrf.mxu0
        %v776 = vadd.f32 0.0, %v775
        %777 = vmatmul.bf16.gmra.mxu0 %v467
        %v778 = vpop.f32.mrf.mxu0
        %v779 = vadd.f32 0.0, %v778
        %v780 = vpop.f32.mrf.mxu0
        %v781 = vadd.f32 0.0, %v780
        %782 = vmatmul.bf16.gmra.mxu0 %v469
        %v783 = vpop.f32.mrf.mxu0
        %v784 = vadd.f32 0.0, %v783
        %v785 = vpop.f32.mrf.mxu0
        %v786 = vadd.f32 0.0, %v785
        %787 = vmatmul.bf16.gmra.mxu0 %v471
        %v788 = vpop.f32.mrf.mxu0
        %v789 = vadd.f32 0.0, %v788
        %v790 = vpop.f32.mrf.mxu0
        %v791 = vadd.f32 0.0, %v790
        %792 = vmatmul.bf16.gmra.mxu0 %v473
        %v793 = vpop.f32.mrf.mxu0
        %v794 = vadd.f32 0.0, %v793
        %v795 = vpop.f32.mrf.mxu0
        %v796 = vadd.f32 0.0, %v795
        %797 = vdwg.mxu0
        %798 = vmatpush.bf16.msra.mxu0 %v618
        %799 = vmatpush.bf16.msra.mxu0 %v616
        %800 = vmatpush.bf16.msra.mxu0 %v614
        %801 = vmatpush.bf16.msra.mxu0 %v612
        %802 = vmatpush.bf16.msra.mxu0 %v610
        %803 = vmatpush.bf16.msra.mxu0 %v608
        %804 = vmatpush.bf16.msra.mxu0 %v606
        %805 = vmatpush.bf16.msra.mxu0 %v604
        %806 = vmatmul.bf16.gmra.mxu0 %v460
        %v807 = vpop.f32.mrf.mxu0
        %v808 = vadd.f32 %v759, %v807
        %v809 = vpop.f32.mrf.mxu0
        %v810 = vadd.f32 %v761, %v809
        %811 = vmatmul.bf16.gmra.mxu0 %v462
        %v812 = vpop.f32.mrf.mxu0
        %v813 = vadd.f32 %v764, %v812
        %v814 = vpop.f32.mrf.mxu0
        %v815 = vadd.f32 %v766, %v814
        %816 = vmatmul.bf16.gmra.mxu0 %v464
        %v817 = vpop.f32.mrf.mxu0
        %v818 = vadd.f32 %v769, %v817
        %v819 = vpop.f32.mrf.mxu0
        %v820 = vadd.f32 %v771, %v819
        %821 = vmatmul.bf16.gmra.mxu0 %v466
        %v822 = vpop.f32.mrf.mxu0
        %v823 = vadd.f32 %v774, %v822
        %v824 = vpop.f32.mrf.mxu0
        %v825 = vadd.f32 %v776, %v824
        %826 = vmatmul.bf16.gmra.mxu0 %v468
        %v827 = vpop.f32.mrf.mxu0
        %v828 = vadd.f32 %v779, %v827
        %v829 = vpop.f32.mrf.mxu0
        %v830 = vadd.f32 %v781, %v829
        %831 = vmatmul.bf16.gmra.mxu0 %v470
        %v832 = vpop.f32.mrf.mxu0
        %v833 = vadd.f32 %v784, %v832
        %v834 = vpop.f32.mrf.mxu0
        %v835 = vadd.f32 %v786, %v834
        %836 = vmatmul.bf16.gmra.mxu0 %v472
        %v837 = vpop.f32.mrf.mxu0
        %v838 = vadd.f32 %v789, %v837
        %v839 = vpop.f32.mrf.mxu0
        %v840 = vadd.f32 %v791, %v839
        %841 = vmatmul.bf16.gmra.mxu0 %v474
        %v842 = vpop.f32.mrf.mxu0
        %v843 = vadd.f32 %v794, %v842
        %v844 = vpop.f32.mrf.mxu0
        %v845 = vadd.f32 %v796, %v844
        %846 = vdwg.mxu0
        %v847 = vmax.f32 %v710, 0.0
        %v848 = vmax.f32 %v712, 0.0
        %v849 = vmax.f32 %v715, 0.0
        %v850 = vmax.f32 %v717, 0.0
        %v851 = vmax.f32 %v720, 0.0
        %v852 = vmax.f32 %v722, 0.0
        %v853 = vmax.f32 %v725, 0.0
        %v854 = vmax.f32 %v727, 0.0
        %v855 = vmax.f32 %v730, 0.0
        %v856 = vmax.f32 %v732, 0.0
        %v857 = vmax.f32 %v735, 0.0
        %v858 = vmax.f32 %v737, 0.0
        %v859 = vmax.f32 %v740, 0.0
        %v860 = vmax.f32 %v742, 0.0
        %v861 = vmax.f32 %v745, 0.0
        %v862 = vmax.f32 %v747, 0.0
        %v863 = vxor.u32 %v808, 2147483648
        %v864 = vxor.u32 %v810, 2147483648
        %v865 = vxor.u32 %v813, 2147483648
        %v866 = vxor.u32 %v815, 2147483648
        %v867 = vxor.u32 %v818, 2147483648
        %v868 = vxor.u32 %v820, 2147483648
        %v869 = vxor.u32 %v823, 2147483648
        %v870 = vxor.u32 %v825, 2147483648
        %v871 = vxor.u32 %v828, 2147483648
        %v872 = vxor.u32 %v830, 2147483648
        %v873 = vxor.u32 %v833, 2147483648
        %v874 = vxor.u32 %v835, 2147483648
        %v875 = vxor.u32 %v838, 2147483648
        %v876 = vxor.u32 %v840, 2147483648
        %v877 = vxor.u32 %v843, 2147483648
        %v878 = vxor.u32 %v845, 2147483648
        %v879 = vmul.f32 %v863, 1.442695
        %v880 = vpow.pop %v879
        %v881 = vmul.f32 %v864, 1.442695
        %v882 = vpow.pop %v881
        %v883 = vmul.f32 %v865, 1.442695
        %v884 = vpow.pop %v883
        %v885 = vmul.f32 %v866, 1.442695
        %v886 = vpow.pop %v885
        %v887 = vmul.f32 %v867, 1.442695
        %v888 = vpow.pop %v887
        %v889 = vmul.f32 %v868, 1.442695
        %v890 = vpow.pop %v889
        %v891 = vmul.f32 %v869, 1.442695
        %v892 = vpow.pop %v891
        %v893 = vmul.f32 %v870, 1.442695
        %v894 = vpow.pop %v893
        %v895 = vmul.f32 %v871, 1.442695
        %v896 = vpow.pop %v895
        %v897 = vmul.f32 %v872, 1.442695
        %v898 = vpow.pop %v897
        %v899 = vmul.f32 %v873, 1.442695
        %v900 = vpow.pop %v899
        %v901 = vmul.f32 %v874, 1.442695
        %v902 = vpow.pop %v901
        %v903 = vmul.f32 %v875, 1.442695
        %v904 = vpow.pop %v903
        %v905 = vmul.f32 %v876, 1.442695
        %v906 = vpow.pop %v905
        %v907 = vmul.f32 %v877, 1.442695
        %v908 = vpow.pop %v907
        %v909 = vmul.f32 %v878, 1.442695
        %v910 = vpow.pop %v909
        %v911 = vadd.f32 %v880, 1.0
        %v912 = vadd.f32 %v882, 1.0
        %v913 = vadd.f32 %v884, 1.0
        %v914 = vadd.f32 %v886, 1.0
        %v915 = vadd.f32 %v888, 1.0
        %v916 = vadd.f32 %v890, 1.0
        %v917 = vadd.f32 %v892, 1.0
        %v918 = vadd.f32 %v894, 1.0
        %v919 = vadd.f32 %v896, 1.0
        %v920 = vadd.f32 %v898, 1.0
        %v921 = vadd.f32 %v900, 1.0
        %v922 = vadd.f32 %v902, 1.0
        %v923 = vadd.f32 %v904, 1.0
        %v924 = vadd.f32 %v906, 1.0
        %v925 = vadd.f32 %v908, 1.0
        %v926 = vadd.f32 %v910, 1.0
        %v927 = vrcp.pop %v911
        %v928 = vmul.f32 %v911, %v927
        %v929 = vsub.f32 1.0, %v928
        %v930 = vmul.f32 %v927, %v929
        %v931 = vadd.f32 %v927, %v930
        %vm932 = vweird.f32 %v911
        %vm933 = vweird.f32 %v927
        %vm934 = vmor %vm932, %vm933
        %v935 = vsel %vm934, %v927, %v931
        %v936 = vand.u32 2147483647, %v911
        %vm937 = vcmp.eq.f32.partialorder %v936, 8.507059e+37
        %v938 = vand.u32 %v911, 2147483648
        %v939 = vor.u32 1.1754944e-38, %v938
        %v940 = vsel %vm937, %v939, %v935
        %v941 = vmul.f32 1.0, %v940
        %v942 = vrcp.pop %v912
        %v943 = vmul.f32 %v912, %v942
        %v944 = vsub.f32 1.0, %v943
        %v945 = vmul.f32 %v942, %v944
        %v946 = vadd.f32 %v942, %v945
        %vm947 = vweird.f32 %v912
        %vm948 = vweird.f32 %v942
        %vm949 = vmor %vm947, %vm948
        %v950 = vsel %vm949, %v942, %v946
        %v951 = vand.u32 2147483647, %v912
        %vm952 = vcmp.eq.f32.partialorder %v951, 8.507059e+37
        %v953 = vand.u32 %v912, 2147483648
        %v954 = vor.u32 1.1754944e-38, %v953
        %v955 = vsel %vm952, %v954, %v950
        %v956 = vmul.f32 1.0, %v955
        %v957 = vrcp.pop %v913
        %v958 = vmul.f32 %v913, %v957
        %v959 = vsub.f32 1.0, %v958
        %v960 = vmul.f32 %v957, %v959
        %v961 = vadd.f32 %v957, %v960
        %vm962 = vweird.f32 %v913
        %vm963 = vweird.f32 %v957
        %vm964 = vmor %vm962, %vm963
        %v965 = vsel %vm964, %v957, %v961
        %v966 = vand.u32 2147483647, %v913
        %vm967 = vcmp.eq.f32.partialorder %v966, 8.507059e+37
        %v968 = vand.u32 %v913, 2147483648
        %v969 = vor.u32 1.1754944e-38, %v968
        %v970 = vsel %vm967, %v969, %v965
        %v971 = vmul.f32 1.0, %v970
        %v972 = vrcp.pop %v914
        %v973 = vmul.f32 %v914, %v972
        %v974 = vsub.f32 1.0, %v973
        %v975 = vmul.f32 %v972, %v974
        %v976 = vadd.f32 %v972, %v975
        %vm977 = vweird.f32 %v914
        %vm978 = vweird.f32 %v972
        %vm979 = vmor %vm977, %vm978
        %v980 = vsel %vm979, %v972, %v976
        %v981 = vand.u32 2147483647, %v914
        %vm982 = vcmp.eq.f32.partialorder %v981, 8.507059e+37
        %v983 = vand.u32 %v914, 2147483648
        %v984 = vor.u32 1.1754944e-38, %v983
        %v985 = vsel %vm982, %v984, %v980
        %v986 = vmul.f32 1.0, %v985
        %v987 = vrcp.pop %v915
        %v988 = vmul.f32 %v915, %v987
        %v989 = vsub.f32 1.0, %v988
        %v990 = vmul.f32 %v987, %v989
        %v991 = vadd.f32 %v987, %v990
        %vm992 = vweird.f32 %v915
        %vm993 = vweird.f32 %v987
        %vm994 = vmor %vm992, %vm993
        %v995 = vsel %vm994, %v987, %v991
        %v996 = vand.u32 2147483647, %v915
        %vm997 = vcmp.eq.f32.partialorder %v996, 8.507059e+37
        %v998 = vand.u32 %v915, 2147483648
        %v999 = vor.u32 1.1754944e-38, %v998
        %v1000 = vsel %vm997, %v999, %v995
        %v1001 = vmul.f32 1.0, %v1000
        %v1002 = vrcp.pop %v916
        %v1003 = vmul.f32 %v916, %v1002
        %v1004 = vsub.f32 1.0, %v1003
        %v1005 = vmul.f32 %v1002, %v1004
        %v1006 = vadd.f32 %v1002, %v1005
        %vm1007 = vweird.f32 %v916
        %vm1008 = vweird.f32 %v1002
        %vm1009 = vmor %vm1007, %vm1008
        %v1010 = vsel %vm1009, %v1002, %v1006
        %v1011 = vand.u32 2147483647, %v916
        %vm1012 = vcmp.eq.f32.partialorder %v1011, 8.507059e+37
        %v1013 = vand.u32 %v916, 2147483648
        %v1014 = vor.u32 1.1754944e-38, %v1013
        %v1015 = vsel %vm1012, %v1014, %v1010
        %v1016 = vmul.f32 1.0, %v1015
        %v1017 = vrcp.pop %v917
        %v1018 = vmul.f32 %v917, %v1017
        %v1019 = vsub.f32 1.0, %v1018
        %v1020 = vmul.f32 %v1017, %v1019
        %v1021 = vadd.f32 %v1017, %v1020
        %vm1022 = vweird.f32 %v917
        %vm1023 = vweird.f32 %v1017
        %vm1024 = vmor %vm1022, %vm1023
        %v1025 = vsel %vm1024, %v1017, %v1021
        %v1026 = vand.u32 2147483647, %v917
        %vm1027 = vcmp.eq.f32.partialorder %v1026, 8.507059e+37
        %v1028 = vand.u32 %v917, 2147483648
        %v1029 = vor.u32 1.1754944e-38, %v1028
        %v1030 = vsel %vm1027, %v1029, %v1025
        %v1031 = vmul.f32 1.0, %v1030
        %v1032 = vrcp.pop %v918
        %v1033 = vmul.f32 %v918, %v1032
        %v1034 = vsub.f32 1.0, %v1033
        %v1035 = vmul.f32 %v1032, %v1034
        %v1036 = vadd.f32 %v1032, %v1035
        %vm1037 = vweird.f32 %v918
        %vm1038 = vweird.f32 %v1032
        %vm1039 = vmor %vm1037, %vm1038
        %v1040 = vsel %vm1039, %v1032, %v1036
        %v1041 = vand.u32 2147483647, %v918
        %vm1042 = vcmp.eq.f32.partialorder %v1041, 8.507059e+37
        %v1043 = vand.u32 %v918, 2147483648
        %v1044 = vor.u32 1.1754944e-38, %v1043
        %v1045 = vsel %vm1042, %v1044, %v1040
        %v1046 = vmul.f32 1.0, %v1045
        %v1047 = vrcp.pop %v919
        %v1048 = vmul.f32 %v919, %v1047
        %v1049 = vsub.f32 1.0, %v1048
        %v1050 = vmul.f32 %v1047, %v1049
        %v1051 = vadd.f32 %v1047, %v1050
        %vm1052 = vweird.f32 %v919
        %vm1053 = vweird.f32 %v1047
        %vm1054 = vmor %vm1052, %vm1053
        %v1055 = vsel %vm1054, %v1047, %v1051
        %v1056 = vand.u32 2147483647, %v919
        %vm1057 = vcmp.eq.f32.partialorder %v1056, 8.507059e+37
        %v1058 = vand.u32 %v919, 2147483648
        %v1059 = vor.u32 1.1754944e-38, %v1058
        %v1060 = vsel %vm1057, %v1059, %v1055
        %v1061 = vmul.f32 1.0, %v1060
        %v1062 = vrcp.pop %v920
        %v1063 = vmul.f32 %v920, %v1062
        %v1064 = vsub.f32 1.0, %v1063
        %v1065 = vmul.f32 %v1062, %v1064
        %v1066 = vadd.f32 %v1062, %v1065
        %vm1067 = vweird.f32 %v920
        %vm1068 = vweird.f32 %v1062
        %vm1069 = vmor %vm1067, %vm1068
        %v1070 = vsel %vm1069, %v1062, %v1066
        %v1071 = vand.u32 2147483647, %v920
        %vm1072 = vcmp.eq.f32.partialorder %v1071, 8.507059e+37
        %v1073 = vand.u32 %v920, 2147483648
        %v1074 = vor.u32 1.1754944e-38, %v1073
        %v1075 = vsel %vm1072, %v1074, %v1070
        %v1076 = vmul.f32 1.0, %v1075
        %v1077 = vrcp.pop %v921
        %v1078 = vmul.f32 %v921, %v1077
        %v1079 = vsub.f32 1.0, %v1078
        %v1080 = vmul.f32 %v1077, %v1079
        %v1081 = vadd.f32 %v1077, %v1080
        %vm1082 = vweird.f32 %v921
        %vm1083 = vweird.f32 %v1077
        %vm1084 = vmor %vm1082, %vm1083
        %v1085 = vsel %vm1084, %v1077, %v1081
        %v1086 = vand.u32 2147483647, %v921
        %vm1087 = vcmp.eq.f32.partialorder %v1086, 8.507059e+37
        %v1088 = vand.u32 %v921, 2147483648
        %v1089 = vor.u32 1.1754944e-38, %v1088
        %v1090 = vsel %vm1087, %v1089, %v1085
        %v1091 = vmul.f32 1.0, %v1090
        %v1092 = vrcp.pop %v922
        %v1093 = vmul.f32 %v922, %v1092
        %v1094 = vsub.f32 1.0, %v1093
        %v1095 = vmul.f32 %v1092, %v1094
        %v1096 = vadd.f32 %v1092, %v1095
        %vm1097 = vweird.f32 %v922
        %vm1098 = vweird.f32 %v1092
        %vm1099 = vmor %vm1097, %vm1098
        %v1100 = vsel %vm1099, %v1092, %v1096
        %v1101 = vand.u32 2147483647, %v922
        %vm1102 = vcmp.eq.f32.partialorder %v1101, 8.507059e+37
        %v1103 = vand.u32 %v922, 2147483648
        %v1104 = vor.u32 1.1754944e-38, %v1103
        %v1105 = vsel %vm1102, %v1104, %v1100
        %v1106 = vmul.f32 1.0, %v1105
        %v1107 = vrcp.pop %v923
        %v1108 = vmul.f32 %v923, %v1107
        %v1109 = vsub.f32 1.0, %v1108
        %v1110 = vmul.f32 %v1107, %v1109
        %v1111 = vadd.f32 %v1107, %v1110
        %vm1112 = vweird.f32 %v923
        %vm1113 = vweird.f32 %v1107
        %vm1114 = vmor %vm1112, %vm1113
        %v1115 = vsel %vm1114, %v1107, %v1111
        %v1116 = vand.u32 2147483647, %v923
        %vm1117 = vcmp.eq.f32.partialorder %v1116, 8.507059e+37
        %v1118 = vand.u32 %v923, 2147483648
        %v1119 = vor.u32 1.1754944e-38, %v1118
        %v1120 = vsel %vm1117, %v1119, %v1115
        %v1121 = vmul.f32 1.0, %v1120
        %v1122 = vrcp.pop %v924
        %v1123 = vmul.f32 %v924, %v1122
        %v1124 = vsub.f32 1.0, %v1123
        %v1125 = vmul.f32 %v1122, %v1124
        %v1126 = vadd.f32 %v1122, %v1125
        %vm1127 = vweird.f32 %v924
        %vm1128 = vweird.f32 %v1122
        %vm1129 = vmor %vm1127, %vm1128
        %v1130 = vsel %vm1129, %v1122, %v1126
        %v1131 = vand.u32 2147483647, %v924
        %vm1132 = vcmp.eq.f32.partialorder %v1131, 8.507059e+37
        %v1133 = vand.u32 %v924, 2147483648
        %v1134 = vor.u32 1.1754944e-38, %v1133
        %v1135 = vsel %vm1132, %v1134, %v1130
        %v1136 = vmul.f32 1.0, %v1135
        %v1137 = vrcp.pop %v925
        %v1138 = vmul.f32 %v925, %v1137
        %v1139 = vsub.f32 1.0, %v1138
        %v1140 = vmul.f32 %v1137, %v1139
        %v1141 = vadd.f32 %v1137, %v1140
        %vm1142 = vweird.f32 %v925
        %vm1143 = vweird.f32 %v1137
        %vm1144 = vmor %vm1142, %vm1143
        %v1145 = vsel %vm1144, %v1137, %v1141
        %v1146 = vand.u32 2147483647, %v925
        %vm1147 = vcmp.eq.f32.partialorder %v1146, 8.507059e+37
        %v1148 = vand.u32 %v925, 2147483648
        %v1149 = vor.u32 1.1754944e-38, %v1148
        %v1150 = vsel %vm1147, %v1149, %v1145
        %v1151 = vmul.f32 1.0, %v1150
        %v1152 = vrcp.pop %v926
        %v1153 = vmul.f32 %v926, %v1152
        %v1154 = vsub.f32 1.0, %v1153
        %v1155 = vmul.f32 %v1152, %v1154
        %v1156 = vadd.f32 %v1152, %v1155
        %vm1157 = vweird.f32 %v926
        %vm1158 = vweird.f32 %v1152
        %vm1159 = vmor %vm1157, %vm1158
        %v1160 = vsel %vm1159, %v1152, %v1156
        %v1161 = vand.u32 2147483647, %v926
        %vm1162 = vcmp.eq.f32.partialorder %v1161, 8.507059e+37
        %v1163 = vand.u32 %v926, 2147483648
        %v1164 = vor.u32 1.1754944e-38, %v1163
        %v1165 = vsel %vm1162, %v1164, %v1160
        %v1166 = vmul.f32 1.0, %v1165
        %v1167 = vmul.f32 %v847, %v941
        %v1168 = vmul.f32 %v848, %v956
        %v1169 = vmul.f32 %v849, %v971
        %v1170 = vmul.f32 %v850, %v986
        %v1171 = vmul.f32 %v851, %v1001
        %v1172 = vmul.f32 %v852, %v1016
        %v1173 = vmul.f32 %v853, %v1031
        %v1174 = vmul.f32 %v854, %v1046
        %v1175 = vmul.f32 %v855, %v1061
        %v1176 = vmul.f32 %v856, %v1076
        %v1177 = vmul.f32 %v857, %v1091
        %v1178 = vmul.f32 %v858, %v1106
        %v1179 = vmul.f32 %v859, %v1121
        %v1180 = vmul.f32 %v860, %v1136
        %v1181 = vmul.f32 %v861, %v1151
        %v1182 = vmul.f32 %v862, %v1166
        %v1183 = vld [vmem:[%s2] sm:$0x1]
        %v1185 = vperm.slane %v1183, 0
        %v1187 = vmul.f32 %v1167, %v1185
        %v1188 = vmul.f32 %v1168, %v1185
        %v1189 = vmul.f32 %v1169, %v1185
        %v1190 = vmul.f32 %v1170, %v1185
        %v1191 = vmul.f32 %v1171, %v1185
        %v1192 = vmul.f32 %v1172, %v1185
        %v1193 = vmul.f32 %v1173, %v1185
        %v1194 = vmul.f32 %v1174, %v1185
        %v1195 = vmul.f32 %v1175, %v1185
        %v1196 = vmul.f32 %v1176, %v1185
        %v1197 = vmul.f32 %v1177, %v1185
        %v1198 = vmul.f32 %v1178, %v1185
        %v1199 = vmul.f32 %v1179, %v1185
        %v1200 = vmul.f32 %v1180, %v1185
        %v1201 = vmul.f32 %v1181, %v1185
        %v1202 = vmul.f32 %v1182, %v1185
        %1203 = vadd.xlane.f32.xlu0 %v1187
        %v1204 = vpop.xlane.xlu0 %1203
        %1205 = vadd.xlane.f32.xlu0 %v1188
        %v1206 = vpop.xlane.xlu0 %1205
        %1207 = vadd.xlane.f32.xlu0 %v1189
        %v1208 = vpop.xlane.xlu0 %1207
        %1209 = vadd.xlane.f32.xlu0 %v1190
        %v1210 = vpop.xlane.xlu0 %1209
        %1211 = vadd.xlane.f32.xlu0 %v1191
        %v1212 = vpop.xlane.xlu0 %1211
        %1213 = vadd.xlane.f32.xlu0 %v1192
        %v1214 = vpop.xlane.xlu0 %1213
        %1215 = vadd.xlane.f32.xlu0 %v1193
        %v1216 = vpop.xlane.xlu0 %1215
        %1217 = vadd.xlane.f32.xlu0 %v1194
        %v1218 = vpop.xlane.xlu0 %1217
        %1219 = vadd.xlane.f32.xlu0 %v1195
        %v1220 = vpop.xlane.xlu0 %1219
        %1221 = vadd.xlane.f32.xlu0 %v1196
        %v1222 = vpop.xlane.xlu0 %1221
        %1223 = vadd.xlane.f32.xlu0 %v1197
        %v1224 = vpop.xlane.xlu0 %1223
        %1225 = vadd.xlane.f32.xlu0 %v1198
        %v1226 = vpop.xlane.xlu0 %1225
        %1227 = vadd.xlane.f32.xlu0 %v1199
        %v1228 = vpop.xlane.xlu0 %1227
        %1229 = vadd.xlane.f32.xlu0 %v1200
        %v1230 = vpop.xlane.xlu0 %1229
        %1231 = vadd.xlane.f32.xlu0 %v1201
        %v1232 = vpop.xlane.xlu0 %1231
        %1233 = vadd.xlane.f32.xlu0 %v1202
        %v1234 = vpop.xlane.xlu0 %1233
        %vm1235 = vcmask 7168
        %1236 = vst.msk [vmem:[%s341] sm:$0xff] %vm1235, %v1204
        %1237 = vst.msk [vmem:[%s341 + $0x8] sm:$0xff] %vm1235, %v1206
        %1238 = vst.msk [vmem:[%s341 + $0x10] sm:$0xff] %vm1235, %v1208
        %1239 = vst.msk [vmem:[%s341 + $0x18] sm:$0xff] %vm1235, %v1210
        %1240 = vst.msk [vmem:[%s341 + $0x20] sm:$0xff] %vm1235, %v1212
        %1241 = vst.msk [vmem:[%s341 + $0x28] sm:$0xff] %vm1235, %v1214
        %1242 = vst.msk [vmem:[%s341 + $0x30] sm:$0xff] %vm1235, %v1216
        %1243 = vst.msk [vmem:[%s341 + $0x38] sm:$0xff] %vm1235, %v1218
        %1244 = vst.msk [vmem:[%s341 + $0x40] sm:$0xff] %vm1235, %v1220
        %1245 = vst.msk [vmem:[%s341 + $0x48] sm:$0xff] %vm1235, %v1222
        %1246 = vst.msk [vmem:[%s341 + $0x50] sm:$0xff] %vm1235, %v1224
        %1247 = vst.msk [vmem:[%s341 + $0x58] sm:$0xff] %vm1235, %v1226
        %1248 = vst.msk [vmem:[%s341 + $0x60] sm:$0xff] %vm1235, %v1228
        %1249 = vst.msk [vmem:[%s341 + $0x68] sm:$0xff] %vm1235, %v1230
        %1250 = vst.msk [vmem:[%s341 + $0x70] sm:$0xff] %vm1235, %v1232
        %1251 = vst.msk [vmem:[%s341 + $0x78] sm:$0xff] %vm1235, %v1234
        %v1252 = vld [vmem:[#allocation2] sm:$0x1]
        %v1253 = vmax.f32 %v1204, %v1212
        %v1254 = vmax.f32 %v1206, %v1214
        %v1255 = vmax.f32 %v1208, %v1216
        %v1256 = vmax.f32 %v1210, %v1218
        %v1257 = vmax.f32 %v1253, %v1220
        %v1258 = vmax.f32 %v1254, %v1222
        %v1259 = vmax.f32 %v1255, %v1224
        %v1260 = vmax.f32 %v1256, %v1226
        %v1261 = vmax.f32 %v1257, %v1228
        %v1262 = vmax.f32 %v1258, %v1230
        %v1263 = vmax.f32 %v1259, %v1232
        %v1264 = vmax.f32 %v1260, %v1234
        %v1265 = vmax.f32 %v1261, %v1262
        %v1266 = vmax.f32 %v1263, %v1264
        %v1267 = vmax.f32 %v1265, %v1266
        %v1268 = vrot.slane %v1267, 4
        %v1269 = vmax.f32 %v1267, %v1268
        %v1270 = vrot.slane %v1269, 2
        %v1271 = vmax.f32 %v1269, %v1270
        %v1272 = vrot.slane %v1271, 1
        %v1273 = vmax.f32 %v1271, %v1272
        %v1274 = vmax.f32 %v1252, %v1273
        %v1275 = vsub.f32 %v1252, %v1274
        %v1276 = vmul.f32 %v1275, 1.442695
        %v1277 = vpow.pop %v1276
        %v1279 = vperm.slane %v1274, 0
        %v1281 = vsub.f32 %v1204, %v1279
        %v1282 = vsub.f32 %v1206, %v1279
        %v1283 = vsub.f32 %v1208, %v1279
        %v1284 = vsub.f32 %v1210, %v1279
        %v1285 = vsub.f32 %v1212, %v1279
        %v1286 = vsub.f32 %v1214, %v1279
        %v1287 = vsub.f32 %v1216, %v1279
        %v1288 = vsub.f32 %v1218, %v1279
        %v1289 = vsub.f32 %v1220, %v1279
        %v1290 = vsub.f32 %v1222, %v1279
        %v1291 = vsub.f32 %v1224, %v1279
        %v1292 = vsub.f32 %v1226, %v1279
        %v1293 = vsub.f32 %v1228, %v1279
        %v1294 = vsub.f32 %v1230, %v1279
        %v1295 = vsub.f32 %v1232, %v1279
        %v1296 = vsub.f32 %v1234, %v1279
        %v1297 = vmul.f32 %v1281, 1.442695
        %v1298 = vpow.pop %v1297
        %v1299 = vmul.f32 %v1282, 1.442695
        %v1300 = vpow.pop %v1299
        %v1301 = vmul.f32 %v1283, 1.442695
        %v1302 = vpow.pop %v1301
        %v1303 = vmul.f32 %v1284, 1.442695
        %v1304 = vpow.pop %v1303
        %v1305 = vmul.f32 %v1285, 1.442695
        %v1306 = vpow.pop %v1305
        %v1307 = vmul.f32 %v1286, 1.442695
        %v1308 = vpow.pop %v1307
        %v1309 = vmul.f32 %v1287, 1.442695
        %v1310 = vpow.pop %v1309
        %v1311 = vmul.f32 %v1288, 1.442695
        %v1312 = vpow.pop %v1311
        %v1313 = vmul.f32 %v1289, 1.442695
        %v1314 = vpow.pop %v1313
        %v1315 = vmul.f32 %v1290, 1.442695
        %v1316 = vpow.pop %v1315
        %v1317 = vmul.f32 %v1291, 1.442695
        %v1318 = vpow.pop %v1317
        %v1319 = vmul.f32 %v1292, 1.442695
        %v1320 = vpow.pop %v1319
        %v1321 = vmul.f32 %v1293, 1.442695
        %v1322 = vpow.pop %v1321
        %v1323 = vmul.f32 %v1294, 1.442695
        %v1324 = vpow.pop %v1323
        %v1325 = vmul.f32 %v1295, 1.442695
        %v1326 = vpow.pop %v1325
        %v1327 = vmul.f32 %v1296, 1.442695
        %v1328 = vpow.pop %v1327
        %v1329 = vld [vmem:[#allocation3] sm:$0x1]
        %v1330 = vmul.f32 %v1277, %v1329
        %v1331 = vsel %vm1235, %v1298, 0.0
        %v1332 = vsel %vm1235, %v1300, 0.0
        %v1333 = vadd.f32 %v1331, %v1332
        %v1334 = vsel %vm1235, %v1302, 0.0
        %v1335 = vadd.f32 %v1333, %v1334
        %v1336 = vsel %vm1235, %v1304, 0.0
        %v1337 = vadd.f32 %v1335, %v1336
        %v1338 = vsel %vm1235, %v1306, 0.0
        %v1339 = vadd.f32 %v1337, %v1338
        %v1340 = vsel %vm1235, %v1308, 0.0
        %v1341 = vadd.f32 %v1339, %v1340
        %v1342 = vsel %vm1235, %v1310, 0.0
        %v1343 = vadd.f32 %v1341, %v1342
        %v1344 = vsel %vm1235, %v1312, 0.0
        %v1345 = vadd.f32 %v1343, %v1344
        %v1346 = vsel %vm1235, %v1314, 0.0
        %v1347 = vadd.f32 %v1345, %v1346
        %v1348 = vsel %vm1235, %v1316, 0.0
        %v1349 = vadd.f32 %v1347, %v1348
        %v1350 = vsel %vm1235, %v1318, 0.0
        %v1351 = vadd.f32 %v1349, %v1350
        %v1352 = vsel %vm1235, %v1320, 0.0
        %v1353 = vadd.f32 %v1351, %v1352
        %v1354 = vsel %vm1235, %v1322, 0.0
        %v1355 = vadd.f32 %v1353, %v1354
        %v1356 = vsel %vm1235, %v1324, 0.0
        %v1357 = vadd.f32 %v1355, %v1356
        %v1358 = vsel %vm1235, %v1326, 0.0
        %v1359 = vadd.f32 %v1357, %v1358
        %v1360 = vsel %vm1235, %v1328, 0.0
        %v1361 = vadd.f32 %v1359, %v1360
        %v1362 = vrot.slane %v1361, 4
        %v1363 = vadd.f32 %v1361, %v1362
        %v1364 = vrot.slane %v1363, 2
        %v1365 = vadd.f32 %v1363, %v1364
        %v1366 = vrot.slane %v1365, 1
        %v1367 = vadd.f32 %v1365, %v1366
        %v1368 = vadd.f32 %v1330, %v1367
        %vm1369 = vcmask 0
        %1370 = vst.msk [vmem:[#allocation3] sm:$0x1] %vm1369, %v1368
        %v1371 = vld [vmem:[#allocation4] sm:$0x3]
        %1373 = vset.pattern.permute.xlu0 0
        %1374 = vperm.xlu0 %1373, %v1277
        %v1375 = vpop.permute.xlu0 %1374
        %v1377 = vperm.slane %v1375, 0
        %v1378 = vmul.f32 %v1377, %v1371
        %v1379 = vunpack.c.l.bf16 %v363
        %v1380 = vunpack.c.h.bf16 %v363
        %v1381 = vunpack.c.l.bf16 %v364
        %v1382 = vunpack.c.h.bf16 %v364
        %v1383 = vunpack.c.l.bf16 %v365
        %v1384 = vunpack.c.h.bf16 %v365
        %v1385 = vunpack.c.l.bf16 %v366
        %v1386 = vunpack.c.h.bf16 %v366
        %v1387 = vunpack.c.l.bf16 %v367
        %v1388 = vunpack.c.h.bf16 %v367
        %v1389 = vunpack.c.l.bf16 %v368
        %v1390 = vunpack.c.h.bf16 %v368
        %v1391 = vunpack.c.l.bf16 %v369
        %v1392 = vunpack.c.h.bf16 %v369
        %v1393 = vunpack.c.l.bf16 %v370
        %v1394 = vunpack.c.h.bf16 %v370
        %v1395 = vunpack.c.l.bf16 %v371
        %v1396 = vunpack.c.h.bf16 %v371
        %v1397 = vunpack.c.l.bf16 %v372
        %v1398 = vunpack.c.h.bf16 %v372
        %v1399 = vunpack.c.l.bf16 %v373
        %v1400 = vunpack.c.h.bf16 %v373
        %v1401 = vunpack.c.l.bf16 %v374
        %v1402 = vunpack.c.h.bf16 %v374
        %v1403 = vunpack.c.l.bf16 %v375
        %v1404 = vunpack.c.h.bf16 %v375
        %v1405 = vunpack.c.l.bf16 %v376
        %v1406 = vunpack.c.h.bf16 %v376
        %v1407 = vunpack.c.l.bf16 %v377
        %v1408 = vunpack.c.h.bf16 %v377
        %v1409 = vunpack.c.l.bf16 %v378
        %v1410 = vunpack.c.h.bf16 %v378
        %1412 = vset.pattern.permute.xlu0 0
        %1413 = vperm.xlu0 %1412, %v1298
        %v1414 = vpop.permute.xlu0 %1413
        %1417 = vset.pattern.permute.xlu0 0
        %1418 = vperm.xlu0 %1417, %v1300
        %v1419 = vpop.permute.xlu0 %1418
        %1422 = vset.pattern.permute.xlu0 0
        %1423 = vperm.xlu0 %1422, %v1302
        %v1424 = vpop.permute.xlu0 %1423
        %1427 = vset.pattern.permute.xlu0 0
        %1428 = vperm.xlu0 %1427, %v1304
        %v1429 = vpop.permute.xlu0 %1428
        %1432 = vset.pattern.permute.xlu0 0
        %1433 = vperm.xlu0 %1432, %v1306
        %v1434 = vpop.permute.xlu0 %1433
        %1437 = vset.pattern.permute.xlu0 0
        %1438 = vperm.xlu0 %1437, %v1308
        %v1439 = vpop.permute.xlu0 %1438
        %1442 = vset.pattern.permute.xlu0 0
        %1443 = vperm.xlu0 %1442, %v1310
        %v1444 = vpop.permute.xlu0 %1443
        %1447 = vset.pattern.permute.xlu0 0
        %1448 = vperm.xlu0 %1447, %v1312
        %v1449 = vpop.permute.xlu0 %1448
        %1452 = vset.pattern.permute.xlu0 0
        %1453 = vperm.xlu0 %1452, %v1314
        %v1454 = vpop.permute.xlu0 %1453
        %1457 = vset.pattern.permute.xlu0 0
        %1458 = vperm.xlu0 %1457, %v1316
        %v1459 = vpop.permute.xlu0 %1458
        %1462 = vset.pattern.permute.xlu0 0
        %1463 = vperm.xlu0 %1462, %v1318
        %v1464 = vpop.permute.xlu0 %1463
        %1467 = vset.pattern.permute.xlu0 0
        %1468 = vperm.xlu0 %1467, %v1320
        %v1469 = vpop.permute.xlu0 %1468
        %1472 = vset.pattern.permute.xlu0 0
        %1473 = vperm.xlu0 %1472, %v1322
        %v1474 = vpop.permute.xlu0 %1473
        %1477 = vset.pattern.permute.xlu0 0
        %1478 = vperm.xlu0 %1477, %v1324
        %v1479 = vpop.permute.xlu0 %1478
        %1482 = vset.pattern.permute.xlu0 0
        %1483 = vperm.xlu0 %1482, %v1326
        %v1484 = vpop.permute.xlu0 %1483
        %1487 = vset.pattern.permute.xlu0 0
        %1488 = vperm.xlu0 %1487, %v1328
        %v1489 = vpop.permute.xlu0 %1488
        %v1491 = vmul.f32 %v1414, %v1379
        %v1492 = vmul.f32 %v1414, %v1380
        %v1493 = vmul.f32 %v1419, %v1381
        %v1494 = vmul.f32 %v1419, %v1382
        %v1495 = vmul.f32 %v1424, %v1383
        %v1496 = vmul.f32 %v1424, %v1384
        %v1497 = vmul.f32 %v1429, %v1385
        %v1498 = vmul.f32 %v1429, %v1386
        %v1499 = vmul.f32 %v1434, %v1387
        %v1500 = vmul.f32 %v1434, %v1388
        %v1501 = vmul.f32 %v1439, %v1389
        %v1502 = vmul.f32 %v1439, %v1390
        %v1503 = vmul.f32 %v1444, %v1391
        %v1504 = vmul.f32 %v1444, %v1392
        %v1505 = vmul.f32 %v1449, %v1393
        %v1506 = vmul.f32 %v1449, %v1394
        %v1507 = vmul.f32 %v1454, %v1395
        %v1508 = vmul.f32 %v1454, %v1396
        %v1509 = vmul.f32 %v1459, %v1397
        %v1510 = vmul.f32 %v1459, %v1398
        %v1511 = vmul.f32 %v1464, %v1399
        %v1512 = vmul.f32 %v1464, %v1400
        %v1513 = vmul.f32 %v1469, %v1401
        %v1514 = vmul.f32 %v1469, %v1402
        %v1515 = vmul.f32 %v1474, %v1403
        %v1516 = vmul.f32 %v1474, %v1404
        %v1517 = vmul.f32 %v1479, %v1405
        %v1518 = vmul.f32 %v1479, %v1406
        %v1519 = vmul.f32 %v1484, %v1407
        %v1520 = vmul.f32 %v1484, %v1408
        %v1521 = vmul.f32 %v1489, %v1409
        %v1522 = vmul.f32 %v1489, %v1410
        %v1523 = vadd.f32 %v1491, %v1493
        %v1524 = vadd.f32 %v1523, %v1495
        %v1525 = vadd.f32 %v1524, %v1497
        %v1526 = vadd.f32 %v1525, %v1499
        %v1527 = vadd.f32 %v1526, %v1501
        %v1528 = vadd.f32 %v1527, %v1503
        %v1529 = vadd.f32 %v1528, %v1505
        %v1530 = vadd.f32 %v1529, %v1507
        %v1531 = vadd.f32 %v1530, %v1509
        %v1532 = vadd.f32 %v1531, %v1511
        %v1533 = vadd.f32 %v1532, %v1513
        %v1534 = vadd.f32 %v1533, %v1515
        %v1535 = vadd.f32 %v1534, %v1517
        %v1536 = vadd.f32 %v1535, %v1519
        %v1537 = vadd.f32 %v1536, %v1521
        %v1538 = vrot.slane %v1537, 4
        %v1539 = vadd.f32 %v1537, %v1538
        %v1540 = vrot.slane %v1539, 2
        %v1541 = vadd.f32 %v1539, %v1540
        %v1542 = vrot.slane %v1541, 1
        %v1543 = vadd.f32 %v1541, %v1542
        %v1544 = vadd.f32 %v1492, %v1494
        %v1545 = vadd.f32 %v1544, %v1496
        %v1546 = vadd.f32 %v1545, %v1498
        %v1547 = vadd.f32 %v1546, %v1500
        %v1548 = vadd.f32 %v1547, %v1502
        %v1549 = vadd.f32 %v1548, %v1504
        %v1550 = vadd.f32 %v1549, %v1506
        %v1551 = vadd.f32 %v1550, %v1508
        %v1552 = vadd.f32 %v1551, %v1510
        %v1553 = vadd.f32 %v1552, %v1512
        %v1554 = vadd.f32 %v1553, %v1514
        %v1555 = vadd.f32 %v1554, %v1516
        %v1556 = vadd.f32 %v1555, %v1518
        %v1557 = vadd.f32 %v1556, %v1520
        %v1558 = vadd.f32 %v1557, %v1522
        %v1559 = vrot.slane %v1558, 4
        %v1560 = vadd.f32 %v1558, %v1559
        %v1561 = vrot.slane %v1560, 2
        %v1562 = vadd.f32 %v1560, %v1561
        %v1563 = vrot.slane %v1562, 1
        %v1564 = vadd.f32 %v1562, %v1563
        %v1567 = vrot.slane %v1564, 7
        %vm1568 = vcmask 1040384
        %v1569 = vsel %vm1568, %v1543, %v1567
        %v1571 = vadd.f32 %v1378, %v1569
        %v1572 = vlaneseq
        %vm1573 = vcmp.ge.s32.totalorder %v1572, 0
        %vm1574 = vcmp.lt.s32.totalorder %v1572, 256
        %vm1575 = vmand %vm1573, %vm1574
        %1576 = vst.msk [vmem:[#allocation4] sm:$0x3] %vm1575, %v1571
        %1577 = vst.msk [vmem:[#allocation2] sm:$0x1] %vm1369, %v1274
        %p1578 = scmp.eq.s32.totalorder %s30, 1
        // Predicated region
        $region45: #{tpu_custom_call.1} parent=31 // pred_check
          %p1579 = pneg %p1578
        $region46: #{tpu_custom_call.1} parent=31 // pred_check_branch
          %1581 = sbr.rel (%p1579) target = $region48
        $region47: #{tpu_custom_call.1} parent=31 // pred_region
          %v1582 = vld [vmem:[#allocation4] sm:$0x3]
          %1583 = vst.msk [vmem:[%s312] sm:$0x3] %vm1575, %v1582
          %v1584 = vld [vmem:[#allocation2] sm:$0x1]
          %1585 = vst.msk [vmem:[%s347] sm:$0x1] %vm1369, %v1584
          %v1586 = vld [vmem:[#allocation3] sm:$0x1]
          %1587 = vst.msk [vmem:[%s350] sm:$0x1] %vm1369, %v1586
        $region48: #{tpu_custom_call.1} parent=31 // pred_fallthru
          _
        %s1588 = sand.u32 %s117, 1
        %s1589 = scalar_lea.sflag [#allocation7], %s1588
        %s1590 = sand.u32 %s117, 1
        %s1591 = smul.addr %s1590, 2
        %s1592 = scalar_lea.vmem [#allocation10], %s1591
        %s1593 = smul.u32 %s29, 2
        %s1594 = sadd.s32 %s1593, %s30
        %s1595 = smul.u32 16, %s1594
        %p1596 = scmp.lt.s32.totalorder %s1595, 63
        %s1597 = scalar_select %p1596, %s1595, 63
        %s1598 = smul.addr %s1597, 8
        %s1599 = scalar_lea.vmem %s4, %s1598
        %p1600 = scmp.lt.s32.totalorder %s29, 1
        %s1601 = scalar_select %p1600, %s29, 1
        %s1602 = scalar_lea.vmem %s5, %s1601
        %p1603 = scmp.lt.s32.totalorder %s29, 1
        %s1604 = scalar_select %p1603, %s29, 1
        %s1605 = scalar_lea.vmem %s6, %s1604
        // Predicated region
        $region49: #{tpu_custom_call.1} parent=31 // pred_check
          %p1606 = pneg %p127
        $region50: #{tpu_custom_call.1} parent=31 // pred_check_branch
          %1608 = sbr.rel (%p1606) target = $region52
        $region51: #{tpu_custom_call.1} parent=31 // pred_region
          %1610 = vsyncadd %s1589, 0
          %s1611 = smul.addr %s29, 2
          %s1612 = scalar_lea.hbm %s3, %s1611
          %s1614 = sshll.u32 %s1592, 4
          %s1615 = int_to_ptr.vmem [resolvable:$true] %s1614
          %s1616 = sshll.u32 %s1612, 4
          %s1617 = int_to_ptr.hbm [resolvable:$true] %s1616
          %1619 = dma.vmem_to_hbm [thread:$0]  %s1615, 32, %s1617, %s1589
        $region52: #{tpu_custom_call.1} parent=31 // pred_fallthru
          _
        // Predicated region
        $region53: #{tpu_custom_call.1} parent=31 // pred_check
          %p1620 = pneg %p157
        $region54: #{tpu_custom_call.1} parent=31 // pred_check_branch
          %1622 = sbr.rel (%p1620) target = $region56
        $region55: #{tpu_custom_call.1} parent=31 // pred_region
          %s1623 = smul.u32 %s29, 2
          %s1624 = sadd.s32 %s1623, %s30
          %s1625 = smul.u32 16, %s1624
        $region56: #{tpu_custom_call.1} parent=31 // pred_fallthru
          _
        // Predicated region
        $region57: #{tpu_custom_call.1} parent=31 // pred_check
          %p1626 = pneg %p183
        $region58: #{tpu_custom_call.1} parent=31 // pred_check_branch
          %1628 = sbr.rel (%p1626) target = $region60
        $region59: #{tpu_custom_call.1} parent=31 // pred_region
          _
        $region60: #{tpu_custom_call.1} parent=31 // pred_fallthru
          _
        // Predicated region
        $region61: #{tpu_custom_call.1} parent=31 // pred_check
          %p1629 = pneg %p209
        $region62: #{tpu_custom_call.1} parent=31 // pred_check_branch
          %1631 = sbr.rel (%p1629) target = $region64
        $region63: #{tpu_custom_call.1} parent=31 // pred_region
          _
        $region64: #{tpu_custom_call.1} parent=31 // pred_fallthru
          _
      $region32: #{tpu_custom_call.1} parent=5 // pred_fallthru
        _
      %p1632 = scmp.le.s32.totalorder 2, %s20
      // Predicated region
      $region65: #{tpu_custom_call.1} parent=5 // pred_check
        %p1633 = pneg %p1632
      $region66: #{tpu_custom_call.1} parent=5 // pred_check_branch
        %1635 = sbr.rel (%p1633) target = $region68
      $region67: #{tpu_custom_call.1} parent=5 // pred_region
        %s1636 = ssub.s32 %s20, 2
        // Predicated region
        $region69: #{tpu_custom_call.1} parent=67 // pred_check
          %p1637 = pneg %p133
        $region70: #{tpu_custom_call.1} parent=67 // pred_check_branch
          %1639 = sbr.rel (%p1637) target = $region72
        $region71: #{tpu_custom_call.1} parent=67 // pred_region
          %s1640 = sand.u32 %s118, 1
          %s1641 = scalar_lea.sflag [#allocation7], %s1640
          %s1642 = sand.u32 %s118, 1
          %s1643 = smul.addr %s1642, 2
          %s1644 = scalar_lea.vmem [#allocation10], %s1643
          %1646 = dma.done %s1641, 32
        $region72: #{tpu_custom_call.1} parent=67 // pred_fallthru
          _
        // Predicated region
        $region73: #{tpu_custom_call.1} parent=67 // pred_check
          %p1647 = pneg %p163
        $region74: #{tpu_custom_call.1} parent=67 // pred_check_branch
          %1649 = sbr.rel (%p1647) target = $region76
        $region75: #{tpu_custom_call.1} parent=67 // pred_region
          %s1650 = smul.u32 %s31, 2
          %s1651 = sadd.s32 %s1650, %s32
          %s1652 = smul.u32 16, %s1651
          %p1653 = scmp.lt.s32.totalorder %s1652, 63
          %s1654 = scalar_select %p1653, %s1652, 63
          %s1655 = smul.addr %s1654, 8
          %s1656 = scalar_lea.vmem %s4, %s1655
        $region76: #{tpu_custom_call.1} parent=67 // pred_fallthru
          _
        // Predicated region
        $region77: #{tpu_custom_call.1} parent=67 // pred_check
          %p1657 = pneg %p189
        $region78: #{tpu_custom_call.1} parent=67 // pred_check_branch
          %1659 = sbr.rel (%p1657) target = $region80
        $region79: #{tpu_custom_call.1} parent=67 // pred_region
          %p1660 = scmp.lt.s32.totalorder %s31, 1
          %s1661 = scalar_select %p1660, %s31, 1
          %s1662 = scalar_lea.vmem %s5, %s1661
        $region80: #{tpu_custom_call.1} parent=67 // pred_fallthru
          _
        // Predicated region
        $region81: #{tpu_custom_call.1} parent=67 // pred_check
          %p1663 = pneg %p215
        $region82: #{tpu_custom_call.1} parent=67 // pred_check_branch
          %1665 = sbr.rel (%p1663) target = $region84
        $region83: #{tpu_custom_call.1} parent=67 // pred_region
          %p1666 = scmp.lt.s32.totalorder %s31, 1
          %s1667 = scalar_select %p1666, %s31, 1
          %s1668 = scalar_lea.vmem %s6, %s1667
        $region84: #{tpu_custom_call.1} parent=67 // pred_fallthru
          _
      $region68: #{tpu_custom_call.1} parent=5 // pred_fallthru
        _
    $region6: #{tpu_custom_call.1} parent=1 // loop_footer
      %s24 = sadd.s32 1, %s20
    $region7: #{tpu_custom_call.1} parent=1 // loop_footer_branch
      %19 = sbr.rel target = $region3
    $region8: #{tpu_custom_call.1} parent=1 // loop_exit
      _
    %1669 = vsyncpa [#allocation6], 1
    %s1670 = scalar_lea.sflag [#allocation6], 1
    %1671 = vsyncpa %s1670, 1
    %1672 = vsyncpa [#allocation9], 1
    %1673 = vsyncpa [#allocation7], 1
    %s1674 = scalar_lea.sflag [#allocation7], 1
    %1675 = vsyncpa %s1674, 1

</llo_original>
